<compile_context>
chip_gen: v6e
topology: v6e:2x2x1
jax: 0.10.0
libtpu: 0.0.40
codegen_flags: <defaults>
</compile_context>

<pallas_src>
import functools
import math

import jax
import jax.numpy as jnp
import numpy as np
from jax.experimental import pallas as pl
from jax.experimental.pallas import tpu as pltpu


def _vmem_capacity_bytes():
    """Physical VMEM of the current TPU generation (conservative default = v7x)."""
    try:
        return int(pltpu.get_tpu_info().vmem_capacity_bytes)
    except Exception:
        return 64 * 1024 * 1024


# --------------------------------------------------------------------------------------
# Phase 1: streaming statistics over the activations (the only pass that touches A).
# Resident (3, td) accumulator rows: [ sum|A| , running mean(A) , running M2(A) ].
# Running mean / M2 are merged across N-tiles with the Chan parallel-variance update,
# so the final per-feature variance is numerically stable even when |mean| >> std.
# --------------------------------------------------------------------------------------
def _stats_kernel(a_ref, mom_ref, *, tn):
    n = pl.program_id(1)                        # trailing N-reduction axis ("arbitrary")
    a = a_ref[...].astype(jnp.float32)          # (tn, td); accumulate in f32
    p_abs = jnp.sum(jnp.abs(a), axis=0, keepdims=True)     # (1, td)
    t_mean = jnp.mean(a, axis=0, keepdims=True)             # (1, td)
    d = a - t_mean
    t_m2 = jnp.sum(d * d, axis=0, keepdims=True)            # (1, td)

    @pl.when(n == 0)
    def _init():
        mom_ref[...] = jnp.concatenate([p_abs, t_mean, t_m2], axis=0)

    @pl.when(n != 0)
    def _merge():
        acc = mom_ref[...]                                   # (3, td)
        prev_cnt = (n * tn).astype(jnp.float32)              # elements already merged
        w = tn / (prev_cnt + tn)
        delta = t_mean - acc[1:2]
        new_abs = acc[0:1] + p_abs
        new_mean = acc[1:2] + delta * w
        new_m2 = acc[2:3] + t_m2 + (delta * delta) * (prev_cnt * w)
        mom_ref[...] = jnp.concatenate([new_abs, new_mean, new_m2], axis=0)


# --------------------------------------------------------------------------------------
# Phase 2: per-feature stats -> GRU cell -> output head -> relaxed-Bernoulli mask.
# Everything is laid out (rows, D-tile) so the feature dim stays on the TPU lane axis.
# --------------------------------------------------------------------------------------
def _head_kernel(mom_ref, ht_ref, u_ref,
                 wxa_ref, wxs_ref, bxe_ref, wh_ref, bh_ref, wob_ref, bob_ref,
                 mask_ref, hy_ref, probs_ref, *, n_rows, hidden):
    mom = mom_ref[...]                                                  # (3, td)
    abs_mean = mom[0:1] * (1.0 / n_rows)                                # |A|.mean(0)
    std0 = jnp.sqrt(jnp.maximum(mom[2:3] * (1.0 / (n_rows - 1)), 0.0))  # A.std(0), unbiased

    # x2h: only the two feature-dependent input rows (|A|.mean(0), A.std(0)) remain; the
    # four constant rows (mean_l/mean_g/std_l/std_g) were folded into bxe by the wrapper,
    # and the two live columns of the x2h weight are pre-sliced to (3H, 1) operands.
    gate_x = wxa_ref[...] * abs_mean + wxs_ref[...] * std0 + bxe_ref[...]   # (3H, td)

    hT = ht_ref[...]                                                    # (H, td)
    gate_h = jnp.dot(wh_ref[...], hT,
                     preferred_element_type=jnp.float32) + bh_ref[...]  # (3H, td)

    H = hidden
    r = jax.nn.sigmoid(gate_x[0:H] + gate_h[0:H])
    z = jax.nn.sigmoid(gate_x[H:2 * H] + gate_h[H:2 * H])
    h_new = jnp.tanh(gate_x[2 * H:3 * H] + r * gate_h[2 * H:3 * H])
    hy = z * hT + (1.0 - z) * h_new                                     # (H, td)
    hy_ref[...] = hy

    # Hybrid p_logit == beta exactly; gamma is dead and its weight row never enters.
    beta = jnp.dot(wob_ref[...], hy,
                   preferred_element_type=jnp.float32) + bob_ref[...]   # (1, td)
    probs = jax.nn.sigmoid(beta)
    probs_ref[...] = probs
    u = u_ref[...]                                                      # (1, td)
    mask_ref[...] = jax.nn.sigmoid(beta + jnp.log(u) - jnp.log1p(-u))   # RelaxedBernoulli T=1


# --------------------------------------------------------------------------------------
# Wrapper
# --------------------------------------------------------------------------------------
def _largest_tile(full, quantum, max_tile):
    """Largest multiple of `quantum` that divides `full` and is <= max_tile.
    Falls back to `full` (single full-extent block) if no such divisor exists."""
    if full <= max_tile:
        return full
    t = (max_tile // quantum) * quantum
    while t >= quantum:
        if full % t == 0:
            return t
        t -= quantum
    return full


def _mask_generator_forward(activations, h, params, u, *,
                            td_max=512, tn_max=None, td_head_max=4096):
    """activations: (N, D); h: (H, D) f32 hidden state (lane-major layout, carried in
    this layout across optimizer steps); u: (1, D) uniform noise in (0, 1).
    Returns (mask (D,), h_new (H, D), sparsity_loss scalar)."""
    N, D = activations.shape
    H = h.shape[0]
    if N < 2:
        raise ValueError("unbiased std over the batch needs N >= 2")
    if D % 128 != 0:
        # TODO(synk): pad D to a multiple of 128 instead of rejecting it.
        raise ValueError("D must be a multiple of 128 for lane-dense tiling")
    wx, bx, wh, bh, wo, bo = params

    itemsize = jnp.dtype(activations.dtype).itemsize
    sub_q = max(8, 32 // itemsize)              # sublane quantum: 8 f32 / 16 bf16 / 32 int8

    vmem_cap = _vmem_capacity_bytes()
    # Per-A-buffer DMA tile budget: large enough that the ~0.35us per-step pipeline
    # overhead is a few % of the tile's DMA time, small enough that the double-buffered
    # pair (+ resident (3, td) outputs) stays well inside even v7x's 64 MiB VMEM.
    tile_budget = min(16 * 1024 * 1024, vmem_cap // 5)

    # ---- phase 1 tile sizing (dtype-aware) --------------------------------------------
    td = _largest_tile(D, 128, td_max)
    tn_cap = max(sub_q, (tile_budget // (td * itemsize)) // sub_q * sub_q)
    if tn_max is not None:
        tn_cap = min(tn_cap, tn_max)
    tn = _largest_tile(N, sub_q, tn_cap)
    if tn * td * itemsize > 2 * tile_budget:
        raise ValueError("activation tile exceeds the VMEM budget; N/D need a "
                         "tile-friendly divisor (or pad the inputs)")
    n_d, n_n = D // td, N // tn

    phase1_vmem_limit = int(min(vmem_cap - 8 * 1024 * 1024,
                                2 * tn * td * itemsize + 8 * 1024 * 1024))

    # ---- phase 1: one streaming pass over A -> per-feature (sum|A|, mean, M2) ----------
    moments = pl.pallas_call(
        functools.partial(_stats_kernel, tn=tn),
        out_shape=jax.ShapeDtypeStruct((3, D), jnp.float32),
        grid=(n_d, n_n),
        in_specs=[pl.BlockSpec((tn, td), lambda d, n: (n, d))],
        out_specs=pl.BlockSpec((3, td), lambda d, n: (0, d)),
        compiler_params=pltpu.CompilerParams(
            dimension_semantics=("parallel", "arbitrary"),
            vmem_limit_bytes=phase1_vmem_limit),
        cost_estimate=pl.CostEstimate(
            flops=6 * N * D, transcendentals=0,
            bytes_accessed=N * D * itemsize + 2 * 3 * D * 4),
    )(activations)

    # ---- tiny glue: stable global scalars + fold constant RNN inputs into the x2h bias --
    sabs, mean_f, m2_f = moments[0], moments[1], moments[2]
    nd_tot = N * D
    mean_l = jnp.sum(sabs) / nd_tot                          # |A|.mean()  (== mean_g)
    g_mean = jnp.mean(mean_f)
    g_m2 = jnp.sum(m2_f) + N * jnp.sum(jnp.square(mean_f - g_mean))
    std_l = jnp.sqrt(jnp.maximum(g_m2 / (nd_tot - 1), 0.0))  # A.std()     (== std_g)
    bx_eff = bx + ((wx[:, 1] + wx[:, 2]) * mean_l
                   + (wx[:, 4] + wx[:, 5]) * std_l)[:, None]             # (3H, 1)
    wxa = wx[:, 0:1]                                          # live x2h columns, pre-sliced
    wxs = wx[:, 3:4]
    wob = wo[1:2, :]                                          # beta row only (gamma dead)
    bob = bo[1:2, :]

    # ---- phase 2 tile sizing: decoupled, much wider lane tile --------------------------
    bytes_per_lane = 4 * (13 * H + 16)          # rough per-lane VMEM (buffers + gates)
    td_head_cap = max(128, ((vmem_cap // 4) // bytes_per_lane) // 128 * 128)
    td_head = _largest_tile(D, 128, min(td_head_max, td_head_cap))

    head = functools.partial(_head_kernel, n_rows=N, hidden=H)
    tile_row = lambda d: (0, d)     # D-tiled rows
    whole = lambda d: (0, 0)        # small weights: resident, never re-fetched
    mask, hy, probs = pl.pallas_call(
        head,
        out_shape=(jax.ShapeDtypeStruct((1, D), jnp.float32),
                   jax.ShapeDtypeStruct((H, D), jnp.float32),
                   jax.ShapeDtypeStruct((1, D), jnp.float32)),
        grid=(D // td_head,),
        in_specs=[
            pl.BlockSpec((3, td_head), tile_row),    # per-feature (sum|A|, mean, M2)
            pl.BlockSpec((H, td_head), tile_row),    # hidden state (H, D) lane-major
            pl.BlockSpec((1, td_head), tile_row),    # uniform noise
            pl.BlockSpec((3 * H, 1), whole),         # x2h column for |A|.mean(0)
            pl.BlockSpec((3 * H, 1), whole),         # x2h column for A.std(0)
            pl.BlockSpec((3 * H, 1), whole),         # effective x2h bias (constants folded)
            pl.BlockSpec((3 * H, H), whole),         # h2h weight
            pl.BlockSpec((3 * H, 1), whole),         # h2h bias
            pl.BlockSpec((1, H), whole),             # output weight (beta row)
            pl.BlockSpec((1, 1), whole),             # output bias (beta)
        ],
        out_specs=(pl.BlockSpec((1, td_head), tile_row),
                   pl.BlockSpec((H, td_head), tile_row),
                   pl.BlockSpec((1, td_head), tile_row)),
        input_output_aliases={1: 1},                 # reuse the h-in buffer for h-out
        compiler_params=pltpu.CompilerParams(
            dimension_semantics=("parallel",),
            vmem_limit_bytes=32 * 1024 * 1024),
    )(moments, h, u, wxa, wxs, bx_eff, wh, bh, wob, bob)

    sparsity_loss = jnp.sum(probs)                   # ||probs||_1  (probs >= 0)
    return mask[0], hy, sparsity_loss


mask_generator_forward = jax.jit(
    _mask_generator_forward, static_argnames=("td_max", "tn_max", "td_head_max"))


# --------------------------------------------------------------------------------------
# Pure-JAX reference in the original PyTorch layout (full original expressions, including
# the gamma*(A-mean)/(std+eps) pass that the kernel eliminates algebraically).
# --------------------------------------------------------------------------------------
def ref_forward(A, h, wx, bx, wh, bh, wo, bo, u):
    """A: (N, D); h: (D, H); u: (1, D)."""
    abs_mean = jnp.abs(A).mean(0)
    mean0 = A.mean(0)
    std0 = jnp.std(A, axis=0, ddof=1)
    mean_l = jnp.abs(A).mean()
    std_l = jnp.std(A, ddof=1)
    feat = jnp.stack(
        [abs_mean, jnp.full_like(abs_mean, mean_l), jnp.full_like(abs_mean, mean_l),
         std0, jnp.full_like(std0, std_l), jnp.full_like(std0, std_l)], axis=1)  # (D, 6)
    gate_x = feat @ wx.T + bx[:, 0]
    gate_h = h @ wh.T + bh[:, 0]
    H = h.shape[1]
    x_r, x_z, x_h = gate_x[:, :H], gate_x[:, H:2 * H], gate_x[:, 2 * H:]
    h_r, h_z, h_h = gate_h[:, :H], gate_h[:, H:2 * H], gate_h[:, 2 * H:]
    r = jax.nn.sigmoid(x_r + h_r)
    z = jax.nn.sigmoid(x_z + h_z)
    h_new = jnp.tanh(x_h + r * h_h)
    hy = z * h + (1.0 - z) * h_new
    out = hy @ wo.T + bo[:, 0]
    gamma, beta = out[:, 0], out[:, 1]
    p_logit = (gamma * ((A - mean0) / (std0 + 1e-12)) + beta).mean(0)
    probs = jax.nn.sigmoid(p_logit)
    logistic = jnp.log(u[0]) - jnp.log1p(-u[0])
    mask = jax.nn.sigmoid(p_logit + logistic)
    return mask, hy, jnp.sum(probs)


if __name__ == "__main__":
    N, D, H, IN = 32, 1024, 32, 6   # batch, #features, hidden_sz, rnn input size

    key = jax.random.PRNGKey(0)
    ks = jax.random.split(key, 9)
    std = 1.0 / math.sqrt(H)
    uni = lambda k, shape: jax.random.uniform(k, shape, jnp.float32, minval=-std, maxval=std)

    wx = uni(ks[0], (3 * H, IN))
    bx = uni(ks[1], (3 * H, 1))
    wh = uni(ks[2], (3 * H, H))
    bh = uni(ks[3], (3 * H, 1))
    wo = uni(ks[4], (2, H))
    bo = uni(ks[5], (2, 1))
    params = (wx, bx, wh, bh, wo, bo)

    # Shift the activations away from zero so the Welford path is exercised in a regime
    # where the naive sum-of-squares formulation would start losing precision.
    activations = 3.0 + jax.random.normal(ks[6], (N, D), jnp.float32)
    # Hidden state carried natively in (H, D) lane-major layout; keep an independent
    # numpy copy because the kernel aliases/reuses the h buffer it is given.
    h0_np = np.asarray(0.1 * jax.random.normal(ks[7], (H, D), jnp.float32))
    u = jax.random.uniform(ks[8], (1, D), jnp.float32, minval=1e-6, maxval=1.0 - 1e-6)

    mask_r, h_r, loss_r = ref_forward(activations, jnp.asarray(h0_np).T,
                                      wx, bx, wh, bh, wo, bo, u)

    def check(tag, out):
        mask, h_new, loss = out
        jax.block_until_ready((mask, h_new, loss))
        np.testing.assert_allclose(np.asarray(mask), np.asarray(mask_r),
                                   rtol=1e-4, atol=1e-5, err_msg=tag)
        np.testing.assert_allclose(np.asarray(h_new), np.asarray(h_r).T,
                                   rtol=1e-4, atol=1e-5, err_msg=tag)
        np.testing.assert_allclose(float(loss), float(loss_r), rtol=1e-4, err_msg=tag)

    # 1) Small tiles on purpose: multi-tile D ("parallel"), multi-step N reduction
    #    (exercises the Welford merge) and a multi-step head grid.
    check("small-tiles",
          mask_generator_forward(activations, jnp.asarray(h0_np), params, u,
                                 td_max=256, tn_max=16, td_head_max=256))

    # 2) Default (production) tile sizing.
    check("default-tiles",
          mask_generator_forward(activations, jnp.asarray(h0_np), params, u))

    # 3) bf16 activation path (dtype-aware sublane quantum / budget); reference on the
    #    same bf16-rounded values so only the kernel's f32 accumulation is compared.
    a_bf16 = activations.astype(jnp.bfloat16)
    mask_rb, h_rb, loss_rb = ref_forward(a_bf16.astype(jnp.float32), jnp.asarray(h0_np).T,
                                         wx, bx, wh, bh, wo, bo, u)
    mask_b, h_b, loss_b = mask_generator_forward(a_bf16, jnp.asarray(h0_np), params, u)
    jax.block_until_ready((mask_b, h_b, loss_b))
    np.testing.assert_allclose(np.asarray(mask_b), np.asarray(mask_rb), rtol=1e-4, atol=1e-5)
    np.testing.assert_allclose(np.asarray(h_b), np.asarray(h_rb).T, rtol=1e-4, atol=1e-5)
    np.testing.assert_allclose(float(loss_b), float(loss_rb), rtol=1e-4)

    print("KERNEL_OK")
</pallas_src>

<mosaic_0001>
module attributes {stable_mosaic.version = 11 : i64} {
  func.func @_stats_kernel(%arg0: i32, %arg1: i32, %arg2: memref<16x256xf32, #tpu.memory_space<vmem>>, %arg3: memref<3x256xf32, #tpu.memory_space<vmem>>) attributes {dimension_semantics = [#tpu.dimension_semantics<parallel>, #tpu.dimension_semantics<arbitrary>], iteration_bounds = array<i64: 4, 2>, scalar_prefetch = 0 : i64, scratch_operands = 0 : i64, tpu.core_type = #tpu.core_type<tc>, window_params = [{transform_indices = @transform_0, window_bounds = array<i64: 16, 256>}, {transform_indices = @transform_1, window_bounds = array<i64: 3, 256>}]} {
    %c0 = arith.constant 0 : index
    %c0_0 = arith.constant 0 : index
    %0 = vector.load %arg2[%c0, %c0_0] : memref<16x256xf32, #tpu.memory_space<vmem>>, vector<16x256xf32>
    %1 = math.absf %0 : vector<16x256xf32>
    %cst = arith.constant dense<0.000000e+00> : vector<256xf32>
    %2 = vector.multi_reduction <add>, %1, %cst [0] : vector<16x256xf32> to vector<256xf32>
    %3 = vector.shape_cast %2 : vector<256xf32> to vector<1x256xf32>
    %cst_1 = arith.constant dense<0.000000e+00> : vector<256xf32>
    %4 = vector.multi_reduction <add>, %0, %cst_1 [0] : vector<16x256xf32> to vector<256xf32>
    %5 = vector.shape_cast %4 : vector<256xf32> to vector<1x256xf32>
    %cst_2 = arith.constant 1.600000e+01 : f32
    %6 = vector.broadcast %cst_2 : f32 to vector<1x256xf32>
    %7 = arith.divf %5, %6 : vector<1x256xf32>
    %8 = vector.broadcast %7 : vector<1x256xf32> to vector<16x256xf32>
    %9 = arith.subf %0, %8 : vector<16x256xf32>
    %10 = arith.mulf %9, %9 : vector<16x256xf32>
    %cst_3 = arith.constant dense<0.000000e+00> : vector<256xf32>
    %11 = vector.multi_reduction <add>, %10, %cst_3 [0] : vector<16x256xf32> to vector<256xf32>
    %12 = vector.shape_cast %11 : vector<256xf32> to vector<1x256xf32>
    %c0_i32 = arith.constant 0 : i32
    %13 = arith.cmpi eq, %arg1, %c0_i32 : i32
    %14 = arith.extui %13 : i1 to i32
    %c0_i32_4 = arith.constant 0 : i32
    %15 = arith.cmpi ne, %14, %c0_i32_4 : i32
    scf.if %15 {
      %19 = tpu.concatenate %3, %7, %12 in 0 : vector<1x256xf32>, vector<1x256xf32>, vector<1x256xf32> -> vector<3x256xf32>
      %c0_7 = arith.constant 0 : index
      %c0_8 = arith.constant 0 : index
      %20 = vector.load %arg3[%c0_7, %c0_8] : memref<3x256xf32, #tpu.memory_space<vmem>>, vector<3x256xf32>
      tpu.vector_store %arg3[%c0_7, %c0_8], %19 {strides = array<i32>} : memref<3x256xf32, #tpu.memory_space<vmem>>, vector<3x256xf32>,
    } else {
    }
    %c0_i32_5 = arith.constant 0 : i32
    %16 = arith.cmpi ne, %arg1, %c0_i32_5 : i32
    %17 = arith.extui %16 : i1 to i32
    %c0_i32_6 = arith.constant 0 : i32
    %18 = arith.cmpi ne, %17, %c0_i32_6 : i32
    scf.if %18 {
      %c0_7 = arith.constant 0 : index
      %c0_8 = arith.constant 0 : index
      %19 = vector.load %arg3[%c0_7, %c0_8] : memref<3x256xf32, #tpu.memory_space<vmem>>, vector<3x256xf32>
      %c16_i32 = arith.constant 16 : i32
      %20 = arith.muli %arg1, %c16_i32 : i32
      %21 = arith.sitofp %20 : i32 to f32
      %cst_9 = arith.constant 1.600000e+01 : f32
      %22 = arith.addf %21, %cst_9 : f32
      %cst_10 = arith.constant 1.600000e+01 : f32
      %23 = arith.divf %cst_10, %22 : f32
      %24 = vector.extract_strided_slice %19 {offsets = [1, 0], sizes = [1, 256], strides = [1, 1]} : vector<3x256xf32> to vector<1x256xf32>
      %25 = arith.subf %7, %24 : vector<1x256xf32>
      %26 = vector.extract_strided_slice %19 {offsets = [0, 0], sizes = [1, 256], strides = [1, 1]} : vector<3x256xf32> to vector<1x256xf32>
      %27 = arith.addf %26, %3 : vector<1x256xf32>
      %28 = vector.extract_strided_slice %19 {offsets = [1, 0], sizes = [1, 256], strides = [1, 1]} : vector<3x256xf32> to vector<1x256xf32>
      %29 = vector.broadcast %23 : f32 to vector<1x256xf32>
      %30 = arith.mulf %25, %29 : vector<1x256xf32>
      %31 = arith.addf %28, %30 : vector<1x256xf32>
      %32 = vector.extract_strided_slice %19 {offsets = [2, 0], sizes = [1, 256], strides = [1, 1]} : vector<3x256xf32> to vector<1x256xf32>
      %33 = arith.addf %32, %12 : vector<1x256xf32>
      %34 = arith.mulf %25, %25 : vector<1x256xf32>
      %35 = arith.mulf %21, %23 : f32
      %36 = vector.broadcast %35 : f32 to vector<1x256xf32>
      %37 = arith.mulf %34, %36 : vector<1x256xf32>
      %38 = arith.addf %33, %37 : vector<1x256xf32>
      %39 = tpu.concatenate %27, %31, %38 in 0 : vector<1x256xf32>, vector<1x256xf32>, vector<1x256xf32> -> vector<3x256xf32>
      %c0_11 = arith.constant 0 : index
      %c0_12 = arith.constant 0 : index
      %40 = vector.load %arg3[%c0_11, %c0_12] : memref<3x256xf32, #tpu.memory_space<vmem>>, vector<3x256xf32>
      tpu.vector_store %arg3[%c0_11, %c0_12], %39 {strides = array<i32>} : memref<3x256xf32, #tpu.memory_space<vmem>>, vector<3x256xf32>,
    } else {
    }
    return
  }
  func.func @transform_0(%arg0: i32, %arg1: i32) -> (i32, i32) {
    %c0_i32 = arith.constant 0 : i32
    return %arg1, %arg0 : i32, i32
  }
  func.func @transform_1(%arg0: i32, %arg1: i32) -> (i32, i32) {
    %c0_i32 = arith.constant 0 : i32
    %c0_i32_0 = arith.constant 0 : i32
    return %c0_i32, %arg0 : i32, i32
  }
}

module attributes {stable_mosaic.version = 11 : i64} {
  func.func @_head_kernel(%arg0: i32, %arg1: memref<3x256xf32, #tpu.memory_space<vmem>>, %arg2: memref<32x256xf32, #tpu.memory_space<vmem>>, %arg3: memref<1x256xf32, #tpu.memory_space<vmem>>, %arg4: memref<96x1xf32, #tpu.memory_space<vmem>>, %arg5: memref<96x1xf32, #tpu.memory_space<vmem>>, %arg6: memref<96x1xf32, #tpu.memory_space<vmem>>, %arg7: memref<96x32xf32, #tpu.memory_space<vmem>>, %arg8: memref<96x1xf32, #tpu.memory_space<vmem>>, %arg9: memref<1x32xf32, #tpu.memory_space<vmem>>, %arg10: memref<1x1xf32, #tpu.memory_space<vmem>>, %arg11: memref<1x256xf32, #tpu.memory_space<vmem>>, %arg12: memref<32x256xf32, #tpu.memory_space<vmem>>, %arg13: memref<1x256xf32, #tpu.memory_space<vmem>>) attributes {dimension_semantics = [#tpu.dimension_semantics<parallel>], iteration_bounds = array<i64: 4>, scalar_prefetch = 0 : i64, scratch_operands = 0 : i64, tpu.core_type = #tpu.core_type<tc>, window_params = [{transform_indices = @transform_0, window_bounds = array<i64: 3, 256>}, {transform_indices = @transform_1, window_bounds = array<i64: 32, 256>}, {transform_indices = @transform_2, window_bounds = array<i64: 1, 256>}, {pipeline_mode = #tpu.pipeline_mode<synchronous>, transform_indices = @transform_3, window_bounds = array<i64: 96, 1>}, {pipeline_mode = #tpu.pipeline_mode<synchronous>, transform_indices = @transform_4, window_bounds = array<i64: 96, 1>}, {pipeline_mode = #tpu.pipeline_mode<synchronous>, transform_indices = @transform_5, window_bounds = array<i64: 96, 1>}, {pipeline_mode = #tpu.pipeline_mode<synchronous>, transform_indices = @transform_6, window_bounds = array<i64: 96, 32>}, {pipeline_mode = #tpu.pipeline_mode<synchronous>, transform_indices = @transform_7, window_bounds = array<i64: 96, 1>}, {pipeline_mode = #tpu.pipeline_mode<synchronous>, transform_indices = @transform_8, window_bounds = array<i64: 1, 32>}, {pipeline_mode = #tpu.pipeline_mode<synchronous>, transform_indices = @transform_9, window_bounds = array<i64: 1, 1>}, {transform_indices = @transform_10, window_bounds = array<i64: 1, 256>}, {transform_indices = @transform_11, window_bounds = array<i64: 32, 256>}, {transform_indices = @transform_12, window_bounds = array<i64: 1, 256>}]} {
    %c0 = arith.constant 0 : index
    %c0_0 = arith.constant 0 : index
    %0 = vector.load %arg1[%c0, %c0_0] : memref<3x256xf32, #tpu.memory_space<vmem>>, vector<3x256xf32>
    %1 = vector.extract_strided_slice %0 {offsets = [0, 0], sizes = [1, 256], strides = [1, 1]} : vector<3x256xf32> to vector<1x256xf32>
    %cst = arith.constant 3.125000e-02 : f32
    %2 = vector.broadcast %cst : f32 to vector<1x256xf32>
    %3 = arith.mulf %1, %2 : vector<1x256xf32>
    %4 = vector.extract_strided_slice %0 {offsets = [2, 0], sizes = [1, 256], strides = [1, 1]} : vector<3x256xf32> to vector<1x256xf32>
    %cst_1 = arith.constant 0.0322580636 : f32
    %5 = vector.broadcast %cst_1 : f32 to vector<1x256xf32>
    %6 = arith.mulf %4, %5 : vector<1x256xf32>
    %cst_2 = arith.constant 0.000000e+00 : f32
    %7 = vector.broadcast %cst_2 : f32 to vector<1x256xf32>
    %8 = arith.maximumf %6, %7 : vector<1x256xf32>
    %9 = math.sqrt %8 : vector<1x256xf32>
    %c0_3 = arith.constant 0 : index
    %c0_4 = arith.constant 0 : index
    %10 = vector.load %arg4[%c0_3, %c0_4] : memref<96x1xf32, #tpu.memory_space<vmem>>, vector<96x1xf32>
    %11 = vector.broadcast %10 : vector<96x1xf32> to vector<96x256xf32>
    %12 = vector.broadcast %3 : vector<1x256xf32> to vector<96x256xf32>
    %13 = arith.mulf %11, %12 : vector<96x256xf32>
    %c0_5 = arith.constant 0 : index
    %c0_6 = arith.constant 0 : index
    %14 = vector.load %arg5[%c0_5, %c0_6] : memref<96x1xf32, #tpu.memory_space<vmem>>, vector<96x1xf32>
    %15 = vector.broadcast %14 : vector<96x1xf32> to vector<96x256xf32>
    %16 = vector.broadcast %9 : vector<1x256xf32> to vector<96x256xf32>
    %17 = arith.mulf %15, %16 : vector<96x256xf32>
    %18 = arith.addf %13, %17 : vector<96x256xf32>
    %c0_7 = arith.constant 0 : index
    %c0_8 = arith.constant 0 : index
    %19 = vector.load %arg6[%c0_7, %c0_8] : memref<96x1xf32, #tpu.memory_space<vmem>>, vector<96x1xf32>
    %20 = vector.broadcast %19 : vector<96x1xf32> to vector<96x256xf32>
    %21 = arith.addf %18, %20 : vector<96x256xf32>
    %c0_9 = arith.constant 0 : index
    %c0_10 = arith.constant 0 : index
    %22 = vector.load %arg2[%c0_9, %c0_10] : memref<32x256xf32, #tpu.memory_space<vmem>>, vector<32x256xf32>
    %c0_11 = arith.constant 0 : index
    %c0_12 = arith.constant 0 : index
    %23 = vector.load %arg7[%c0_11, %c0_12] : memref<96x32xf32, #tpu.memory_space<vmem>>, vector<96x32xf32>
    %cst_13 = arith.constant dense<0.000000e+00> : vector<96x256xf32>
    %24 = tpu.matmul %23, %22, %cst_13 {dimension_numbers = #tpu.dot_dimension_numbers<[1], [0], [0], [1], [0, 0, 1, 1], [], []>} : vector<96x32xf32>, vector<32x256xf32>, vector<96x256xf32> -> vector<96x256xf32>
    %c0_14 = arith.constant 0 : index
    %c0_15 = arith.constant 0 : index
    %25 = vector.load %arg8[%c0_14, %c0_15] : memref<96x1xf32, #tpu.memory_space<vmem>>, vector<96x1xf32>
    %26 = vector.broadcast %25 : vector<96x1xf32> to vector<96x256xf32>
    %27 = arith.addf %24, %26 : vector<96x256xf32>
    %28 = vector.extract_strided_slice %21 {offsets = [0, 0], sizes = [32, 256], strides = [1, 1]} : vector<96x256xf32> to vector<32x256xf32>
    %29 = vector.extract_strided_slice %27 {offsets = [0, 0], sizes = [32, 256], strides = [1, 1]} : vector<96x256xf32> to vector<32x256xf32>
    %30 = arith.addf %28, %29 : vector<32x256xf32>
    %31 = arith.negf %30 : vector<32x256xf32>
    %32 = math.exp %31 : vector<32x256xf32>
    %cst_16 = arith.constant 1.000000e+00 : f32
    %33 = vector.broadcast %cst_16 : f32 to vector<32x256xf32>
    %34 = arith.addf %33, %32 : vector<32x256xf32>
    %35 = arith.divf %33, %34 : vector<32x256xf32>
    %36 = vector.extract_strided_slice %21 {offsets = [32, 0], sizes = [32, 256], strides = [1, 1]} : vector<96x256xf32> to vector<32x256xf32>
    %37 = vector.extract_strided_slice %27 {offsets = [32, 0], sizes = [32, 256], strides = [1, 1]} : vector<96x256xf32> to vector<32x256xf32>
    %38 = arith.addf %36, %37 : vector<32x256xf32>
    %39 = arith.negf %38 : vector<32x256xf32>
    %40 = math.exp %39 : vector<32x256xf32>
    %cst_17 = arith.constant 1.000000e+00 : f32
    %41 = vector.broadcast %cst_17 : f32 to vector<32x256xf32>
    %42 = arith.addf %41, %40 : vector<32x256xf32>
    %43 = arith.divf %41, %42 : vector<32x256xf32>
    %44 = vector.extract_strided_slice %21 {offsets = [64, 0], sizes = [32, 256], strides = [1, 1]} : vector<96x256xf32> to vector<32x256xf32>
    %45 = vector.extract_strided_slice %27 {offsets = [64, 0], sizes = [32, 256], strides = [1, 1]} : vector<96x256xf32> to vector<32x256xf32>
    %46 = arith.mulf %35, %45 : vector<32x256xf32>
    %47 = arith.addf %44, %46 : vector<32x256xf32>
    %48 = math.tanh %47 : vector<32x256xf32>
    %49 = arith.mulf %43, %22 : vector<32x256xf32>
    %cst_18 = arith.constant 1.000000e+00 : f32
    %50 = vector.broadcast %cst_18 : f32 to vector<32x256xf32>
    %51 = arith.subf %50, %43 : vector<32x256xf32>
    %52 = arith.mulf %51, %48 : vector<32x256xf32>
    %53 = arith.addf %49, %52 : vector<32x256xf32>
    %c0_19 = arith.constant 0 : index
    %c0_20 = arith.constant 0 : index
    %54 = vector.load %arg12[%c0_19, %c0_20] : memref<32x256xf32, #tpu.memory_space<vmem>>, vector<32x256xf32>
    tpu.vector_store %arg12[%c0_19, %c0_20], %53 {strides = array<i32>} : memref<32x256xf32, #tpu.memory_space<vmem>>, vector<32x256xf32>,
    %c0_21 = arith.constant 0 : index
    %c0_22 = arith.constant 0 : index
    %55 = vector.load %arg9[%c0_21, %c0_22] : memref<1x32xf32, #tpu.memory_space<vmem>>, vector<1x32xf32>
    %cst_23 = arith.constant dense<0.000000e+00> : vector<1x256xf32>
    %56 = tpu.matmul %55, %53, %cst_23 {dimension_numbers = #tpu.dot_dimension_numbers<[1], [0], [0], [1], [0, 0, 1, 1], [], []>} : vector<1x32xf32>, vector<32x256xf32>, vector<1x256xf32> -> vector<1x256xf32>
    %c0_24 = arith.constant 0 : index
    %c0_25 = arith.constant 0 : index
    %57 = vector.load %arg10[%c0_24, %c0_25] : memref<1x1xf32, #tpu.memory_space<vmem>>, vector<1x1xf32>
    %58 = vector.broadcast %57 : vector<1x1xf32> to vector<1x256xf32>
    %59 = arith.addf %56, %58 : vector<1x256xf32>
    %60 = arith.negf %59 : vector<1x256xf32>
    %61 = math.exp %60 : vector<1x256xf32>
    %cst_26 = arith.constant 1.000000e+00 : f32
    %62 = vector.broadcast %cst_26 : f32 to vector<1x256xf32>
    %63 = arith.addf %62, %61 : vector<1x256xf32>
    %64 = arith.divf %62, %63 : vector<1x256xf32>
    %c0_27 = arith.constant 0 : index
    %c0_28 = arith.constant 0 : index
    %65 = vector.load %arg13[%c0_27, %c0_28] : memref<1x256xf32, #tpu.memory_space<vmem>>, vector<1x256xf32>
    tpu.vector_store %arg13[%c0_27, %c0_28], %64 {strides = array<i32>} : memref<1x256xf32, #tpu.memory_space<vmem>>, vector<1x256xf32>,
    %c0_29 = arith.constant 0 : index
    %c0_30 = arith.constant 0 : index
    %66 = vector.load %arg3[%c0_29, %c0_30] : memref<1x256xf32, #tpu.memory_space<vmem>>, vector<1x256xf32>
    %67 = math.log %66 : vector<1x256xf32>
    %68 = arith.addf %59, %67 : vector<1x256xf32>
    %cst_31 = arith.constant 0.000000e+00 : f32
    %69 = vector.broadcast %cst_31 : f32 to vector<1x256xf32>
    %70 = arith.subf %69, %66 : vector<1x256xf32>
    %71 = math.log1p %70 : vector<1x256xf32>
    %72 = arith.subf %68, %71 : vector<1x256xf32>
    %73 = arith.negf %72 : vector<1x256xf32>
    %74 = math.exp %73 : vector<1x256xf32>
    %cst_32 = arith.constant 1.000000e+00 : f32
    %75 = vector.broadcast %cst_32 : f32 to vector<1x256xf32>
    %76 = arith.addf %75, %74 : vector<1x256xf32>
    %77 = arith.divf %75, %76 : vector<1x256xf32>
    %c0_33 = arith.constant 0 : index
    %c0_34 = arith.constant 0 : index
    %78 = vector.load %arg11[%c0_33, %c0_34] : memref<1x256xf32, #tpu.memory_space<vmem>>, vector<1x256xf32>
    tpu.vector_store %arg11[%c0_33, %c0_34], %77 {strides = array<i32>} : memref<1x256xf32, #tpu.memory_space<vmem>>, vector<1x256xf32>,
    return
  }
  func.func @transform_0(%arg0: i32) -> (i32, i32) {
    %c0_i32 = arith.constant 0 : i32
    %c0_i32_0 = arith.constant 0 : i32
    return %c0_i32, %arg0 : i32, i32
  }
  func.func @transform_1(%arg0: i32) -> (i32, i32) {
    %c0_i32 = arith.constant 0 : i32
    %c0_i32_0 = arith.constant 0 : i32
    return %c0_i32, %arg0 : i32, i32
  }
  func.func @transform_2(%arg0: i32) -> (i32, i32) {
    %c0_i32 = arith.constant 0 : i32
    %c0_i32_0 = arith.constant 0 : i32
    return %c0_i32, %arg0 : i32, i32
  }
  func.func @transform_3(%arg0: i32) -> (i32, i32) {
    %c0_i32 = arith.constant 0 : i32
    %c0_i32_0 = arith.constant 0 : i32
    %c0_i32_1 = arith.constant 0 : i32
    return %c0_i32, %c0_i32_0 : i32, i32
  }
  func.func @transform_4(%arg0: i32) -> (i32, i32) {
    %c0_i32 = arith.constant 0 : i32
    %c0_i32_0 = arith.constant 0 : i32
    %c0_i32_1 = arith.constant 0 : i32
    return %c0_i32, %c0_i32_0 : i32, i32
  }
  func.func @transform_5(%arg0: i32) -> (i32, i32) {
    %c0_i32 = arith.constant 0 : i32
    %c0_i32_0 = arith.constant 0 : i32
    %c0_i32_1 = arith.constant 0 : i32
    return %c0_i32, %c0_i32_0 : i32, i32
  }
  func.func @transform_6(%arg0: i32) -> (i32, i32) {
    %c0_i32 = arith.constant 0 : i32
    %c0_i32_0 = arith.constant 0 : i32
    %c0_i32_1 = arith.constant 0 : i32
    return %c0_i32, %c0_i32_0 : i32, i32
  }
  func.func @transform_7(%arg0: i32) -> (i32, i32) {
    %c0_i32 = arith.constant 0 : i32
    %c0_i32_0 = arith.constant 0 : i32
    %c0_i32_1 = arith.constant 0 : i32
    return %c0_i32, %c0_i32_0 : i32, i32
  }
  func.func @transform_8(%arg0: i32) -> (i32, i32) {
    %c0_i32 = arith.constant 0 : i32
    %c0_i32_0 = arith.constant 0 : i32
    %c0_i32_1 = arith.constant 0 : i32
    return %c0_i32, %c0_i32_0 : i32, i32
  }
  func.func @transform_9(%arg0: i32) -> (i32, i32) {
    %c0_i32 = arith.constant 0 : i32
    %c0_i32_0 = arith.constant 0 : i32
    %c0_i32_1 = arith.constant 0 : i32
    return %c0_i32, %c0_i32_0 : i32, i32
  }
  func.func @transform_10(%arg0: i32) -> (i32, i32) {
    %c0_i32 = arith.constant 0 : i32
    %c0_i32_0 = arith.constant 0 : i32
    return %c0_i32, %arg0 : i32, i32
  }
  func.func @transform_11(%arg0: i32) -> (i32, i32) {
    %c0_i32 = arith.constant 0 : i32
    %c0_i32_0 = arith.constant 0 : i32
    return %c0_i32, %arg0 : i32, i32
  }
  func.func @transform_12(%arg0: i32) -> (i32, i32) {
    %c0_i32 = arith.constant 0 : i32
    %c0_i32_0 = arith.constant 0 : i32
    return %c0_i32, %arg0 : i32, i32
  }
}

</mosaic_0001>

<llo_original>
// kernel: _mask_generator_forward.2
$region0: #{_mask_generator_forward.2}
  #allocation0 [shape = 'u32[]', space=smem, size = 0x4, offset = 0x4, fixed_abs, tag = 'smem constant byte address 0x4 - core index']
  #allocation1 [shape = 'u32[144,128]{1,0:T(1,128)}', space=vmem, size = 0x12000, scoped, tag = 'internal scratch']
  %s0 = inlined_call_operand.vmem [shape: f32[32,1024], index: 0, kind: input, shape index: {}]
  %s1 = inlined_call_operand.vmem [shape: f32[3,1024], index: 1, kind: output, shape index: {}]
  %s2 = sld [smem:[#allocation0]]
  $region68: #{_mask_generator_forward.2} parent=0
    _
  %s4 = ssub.s32 1, %s2
  %s5 = scalar_select 0, %s4, %s2
  $region1: #{_mask_generator_forward.2} parent=0
    #allocation2 [shape = 'u8[32768]{0}', space=vmem, size = 0x8000, scoped, tag = 'input window, operand 0']
    loop: start=0, step=1, limit=10
    $region2: #{_mask_generator_forward.2} parent=1 // loop_pre_header
      _
    $region3: #{_mask_generator_forward.2} parent=1 // loop_header
      %s7 = sphi 0, %s11
      %p8 = scmp.ge.s32.totalorder %s7, 10
      %s14 = sphi 0, %s26
      %s15 = sphi 0, %s22
      %s16 = sphi 0, %s14
      %s17 = sphi 0, %s15
      %s18 = sphi 0, %s16
      %s19 = sphi 0, %s17
      %s31 = sphi 0, %s33
      %s34 = sphi 0, %s31
      %s35 = sphi 0, %s34
      %s51 = sphi 0, %s35
      %s57 = sphi 0, %s59
      %s60 = sphi 0, %s57
      %s61 = sphi 0, %s60
      %s77 = sphi 0, %s61
    $region4: #{_mask_generator_forward.2} parent=1 // loop_header_branch
      %10 = sbr.rel (%p8) target = $region8
    $region5: #{_mask_generator_forward.2} parent=1 // loop_body
      %s12 = ssub.s32 %s7, 1
      %s13 = ssub.s32 %s7, 2
      %s20 = sadd.s32 1, %s15
      %p21 = scmp.ge.s32.totalorder %s20, 2
      %s22 = scalar_select %p21, 0, %s20
      %s23 = sadd.s32 1, %s14
      %s24 = scalar_select %p21, %s23, %s14
      %p25 = scmp.ge.s32.totalorder %s24, 4
      %s26 = scalar_select %p25, 0, %s24
      %s27 = ssub.s32 %s15, %s22
      %s28 = ssub.s32 %s14, %s26
      %s29 = sor.u32 %s27, %s28
      %p30 = scmp.eq.s32.totalorder %s29, 0
      %s32 = sadd.s32 %s31, 1
      %s33 = scalar_select %p30, %s31, %s32
      %p36 = pneg %p30
      %p37 = scmp.eq.s32.totalorder %s7, 7
      %p38 = por %p36, %p37
      %p39 = scmp.ne.s32.totalorder %s31, %s34
      %p40 = scmp.eq.s32.totalorder %s7, 0
      %p41 = por %p39, %p40
      %p42 = scmp.ne.s32.totalorder %s31, %s34
      %p43 = scmp.eq.s32.totalorder %s12, 7
      %p44 = por %p42, %p43
      %p45 = scmp.ne.s32.totalorder %s34, %s35
      %p46 = scmp.eq.s32.totalorder %s12, 0
      %p47 = por %p45, %p46
      %p48 = scmp.ne.s32.totalorder %s34, %s35
      %p49 = scmp.eq.s32.totalorder %s13, 7
      %p50 = por %p48, %p49
      %p52 = scmp.ne.s32.totalorder %s35, %s51
      %p53 = scmp.eq.s32.totalorder %s13, 0
      %p54 = por %p52, %p53
      %s55 = ssub.s32 %s14, %s26
      %p56 = scmp.eq.s32.totalorder %s55, 0
      %s58 = sadd.s32 %s57, 1
      %s59 = scalar_select %p56, %s57, %s58
      %p62 = pneg %p56
      %p63 = scmp.eq.s32.totalorder %s7, 7
      %p64 = por %p62, %p63
      %p65 = scmp.ne.s32.totalorder %s57, %s60
      %p66 = scmp.eq.s32.totalorder %s7, 0
      %p67 = por %p65, %p66
      %p68 = scmp.ne.s32.totalorder %s57, %s60
      %p69 = scmp.eq.s32.totalorder %s12, 7
      %p70 = por %p68, %p69
      %p71 = scmp.ne.s32.totalorder %s60, %s61
      %p72 = scmp.eq.s32.totalorder %s12, 0
      %p73 = por %p71, %p72
      %p74 = scmp.ne.s32.totalorder %s60, %s61
      %p75 = scmp.eq.s32.totalorder %s13, 7
      %p76 = por %p74, %p75
      %p78 = scmp.ne.s32.totalorder %s61, %s77
      %p79 = scmp.eq.s32.totalorder %s13, 0
      %p80 = por %p78, %p79
      %p81 = scmp.le.s32.totalorder 1, %s7
      %p82 = scmp.lt.s32.totalorder %s7, 9
      %p83 = pnand %p81, %p82
      %p84 = pneg %p83
      // Predicated region
      $region9: #{_mask_generator_forward.2} parent=5 // pred_check
        _
      $region10: #{_mask_generator_forward.2} parent=5 // pred_check_branch
        %86 = sbr.rel (%p83) target = $region12
      $region11: #{_mask_generator_forward.2} parent=5 // pred_region
        %s87 = ssub.s32 %s7, 1
      $region12: #{_mask_generator_forward.2} parent=5 // pred_fallthru
        _
      %p88 = scmp.lt.s32.totalorder %s7, 8
      // Predicated region
      $region13: #{_mask_generator_forward.2} parent=5 // pred_check
        %p89 = pneg %p88
      $region14: #{_mask_generator_forward.2} parent=5 // pred_check_branch
        %91 = sbr.rel (%p89) target = $region16
      $region15: #{_mask_generator_forward.2} parent=5 // pred_region
        // Predicated region
        $region17: #{_mask_generator_forward.2} parent=15 // pred_check
          %p92 = pneg %p41
        $region18: #{_mask_generator_forward.2} parent=15 // pred_check_branch
          %94 = sbr.rel (%p92) target = $region20
        $region19: #{_mask_generator_forward.2} parent=15 // pred_region
          %s95 = sand.u32 %s31, 1
          %s96 = sand.u32 %s31, 1
          %s97 = smul.addr %s96, 32
          %s98 = scalar_lea.vmem [#allocation2], %s97
          %s99 = smul.u32 2, %s15
          %s100 = smul.u32 2, %s14
          %s101 = smul.addr %s99, 8
          %s102 = sadd.s32 %s100, %s101
          %s103 = smul.addr %s102, 8
          %s104 = scalar_lea.vmem %s0, %s103
          // Predicated region
          $region21: #{_mask_generator_forward.2} parent=19 // pred_check
            _
          $region22: #{_mask_generator_forward.2} parent=19 // pred_check_branch
            %106 = sbr.rel (0) target = $region24
          $region23: #{_mask_generator_forward.2} parent=19 // pred_region
            // Predicated region
            $region25: #{_mask_generator_forward.2} parent=23 // pred_check
              _
            $region26: #{_mask_generator_forward.2} parent=23 // pred_check_branch
              %108 = sbr.rel (0) target = $region28
            $region27: #{_mask_generator_forward.2} parent=23 // pred_region
              loop: start=0, step=1, limit=1
              $region29: #{_mask_generator_forward.2} parent=27 // loop_pre_header
                _
              $region30: #{_mask_generator_forward.2} parent=27 // loop_header
                %s110 = sphi 0, %s114
                %p111 = scmp.ge.s32.totalorder %s110, 1
                %s115 = sphi %s104, %s104
                %s116 = sphi %s98, %s98
              $region31: #{_mask_generator_forward.2} parent=27 // loop_header_branch
                %113 = sbr.rel (%p111) target = $region35
              $region32: #{_mask_generator_forward.2} parent=27 // loop_body
                %v117 = vld [vmem:[%s115] sm:$0xff]
                %118 = vst [vmem:[%s116] sm:$0xff] %v117
                %v119 = vld [vmem:[%s115 + $0x8] sm:$0xff]
                %120 = vst [vmem:[%s116 + $0x8] sm:$0xff] %v119
                %v121 = vld [vmem:[%s115 + $0x40] sm:$0xff]
                %122 = vst [vmem:[%s116 + $0x10] sm:$0xff] %v121
                %v123 = vld [vmem:[%s115 + $0x48] sm:$0xff]
                %124 = vst [vmem:[%s116 + $0x18] sm:$0xff] %v123
              $region33: #{_mask_generator_forward.2} parent=27 // loop_footer
                %s114 = sadd.s32 1, %s110
              $region34: #{_mask_generator_forward.2} parent=27 // loop_footer_branch
                %109 = sbr.rel target = $region30
              $region35: #{_mask_generator_forward.2} parent=27 // loop_exit
                _
            $region28: #{_mask_generator_forward.2} parent=23 // pred_fallthru
              _
            // Predicated region
            $region36: #{_mask_generator_forward.2} parent=23 // pred_check
              _
            $region37: #{_mask_generator_forward.2} parent=23 // pred_check_branch
              %126 = sbr.rel target = $region39
            $region38: #{_mask_generator_forward.2} parent=23 // pred_region
              _
            $region39: #{_mask_generator_forward.2} parent=23 // pred_fallthru
              _
          $region24: #{_mask_generator_forward.2} parent=19 // pred_fallthru
            _
          %127 = vnop
        $region20: #{_mask_generator_forward.2} parent=15 // pred_fallthru
          _
      $region16: #{_mask_generator_forward.2} parent=5 // pred_fallthru
        _
      %p128 = scmp.le.s32.totalorder 1, %s7
      %p129 = scmp.lt.s32.totalorder %s7, 9
      %p130 = pnand %p128, %p129
      %p131 = pneg %p130
      // Predicated region
      $region40: #{_mask_generator_forward.2} parent=5 // pred_check
        _
      $region41: #{_mask_generator_forward.2} parent=5 // pred_check_branch
        %133 = sbr.rel (%p130) target = $region43
      $region42: #{_mask_generator_forward.2} parent=5 // pred_region
        %s134 = ssub.s32 %s7, 1
        %s135 = sand.u32 %s34, 1
        %s136 = sand.u32 %s34, 1
        %s137 = smul.addr %s136, 32
        %s138 = scalar_lea.vmem [#allocation2], %s137
        // Predicated region
        $region44: #{_mask_generator_forward.2} parent=42 // pred_check
          %p139 = pneg %p47
        $region45: #{_mask_generator_forward.2} parent=42 // pred_check_branch
          %141 = sbr.rel (%p139) target = $region47
        $region46: #{_mask_generator_forward.2} parent=42 // pred_region
          _
        $region47: #{_mask_generator_forward.2} parent=42 // pred_fallthru
          _
        %s142 = sand.u32 %s34, 1
        %s143 = sand.u32 %s34, 1
        %s144 = smul.addr %s143, 32
        %s145 = scalar_lea.vmem [#allocation2], %s144
        %p146 = pneg %p47
        %p147 = pneg %p44
        %p148 = pneg %p73
        %p149 = pneg %p70
        %s150 = smul.u32 2, %s16
        %p151 = scmp.lt.s32.totalorder %s150, 7
        %s152 = scalar_select %p151, %s150, 7
        %s153 = smul.addr %s152, 4
        %s154 = scalar_lea.vmem %s1, %s153
        %s155 = smul.u32 2, %s17
        %s156 = smul.u32 2, %s16
        %s157 = smul.u32 2, %s16
        %p158 = scmp.lt.s32.totalorder %s157, 7
        %s159 = scalar_select %p158, %s157, 7
        %s160 = smul.addr %s159, 4
        %s161 = scalar_lea.vmem %s1, %s160
        %s162 = smul.u32 2, %s16
        %v163 = vld [vmem:[%s138] sm:$0xff]
        %v164 = vld [vmem:[%s138 + $0x8] sm:$0xff]
        %v165 = vld [vmem:[%s138 + $0x10] sm:$0xff]
        %v166 = vld [vmem:[%s138 + $0x18] sm:$0xff]
        %v167 = vand.u32 2147483647, %v163
        %v168 = vand.u32 2147483647, %v164
        %v169 = vand.u32 2147483647, %v165
        %v170 = vand.u32 2147483647, %v166
        %v171 = vadd.f32 %v167, %v169
        %v172 = vrot.slane %v171, 4
        %v173 = vadd.f32 %v171, %v172
        %v174 = vrot.slane %v173, 2
        %v175 = vadd.f32 %v173, %v174
        %v176 = vrot.slane %v175, 1
        %v177 = vadd.f32 %v175, %v176
        %v178 = vadd.f32 %v168, %v170
        %v179 = vrot.slane %v178, 4
        %v180 = vadd.f32 %v178, %v179
        %v181 = vrot.slane %v180, 2
        %v182 = vadd.f32 %v180, %v181
        %v183 = vrot.slane %v182, 1
        %v184 = vadd.f32 %v182, %v183
        %v185 = vadd.f32 %v163, %v165
        %v186 = vrot.slane %v185, 4
        %v187 = vadd.f32 %v185, %v186
        %v188 = vrot.slane %v187, 2
        %v189 = vadd.f32 %v187, %v188
        %v190 = vrot.slane %v189, 1
        %v191 = vadd.f32 %v189, %v190
        %v192 = vadd.f32 %v164, %v166
        %v193 = vrot.slane %v192, 4
        %v194 = vadd.f32 %v192, %v193
        %v195 = vrot.slane %v194, 2
        %v196 = vadd.f32 %v194, %v195
        %v197 = vrot.slane %v196, 1
        %v198 = vadd.f32 %v196, %v197
        %v199 = vrcp.pop 16.0
        %v200 = vmul.f32 %v191, %v199
        %v201 = vmul.f32 %v198, %v199
        %v202 = vsub.f32 %v163, %v200
        %v203 = vsub.f32 %v164, %v201
        %v204 = vsub.f32 %v165, %v200
        %v205 = vsub.f32 %v166, %v201
        %v206 = vmul.f32 %v202, %v202
        %v207 = vmul.f32 %v203, %v203
        %v208 = vmul.f32 %v204, %v204
        %v209 = vmul.f32 %v205, %v205
        %v210 = vadd.f32 %v206, %v208
        %v211 = vrot.slane %v210, 4
        %v212 = vadd.f32 %v210, %v211
        %v213 = vrot.slane %v212, 2
        %v214 = vadd.f32 %v212, %v213
        %v215 = vrot.slane %v214, 1
        %v216 = vadd.f32 %v214, %v215
        %v217 = vadd.f32 %v207, %v209
        %v218 = vrot.slane %v217, 4
        %v219 = vadd.f32 %v217, %v218
        %v220 = vrot.slane %v219, 2
        %v221 = vadd.f32 %v219, %v220
        %v222 = vrot.slane %v221, 1
        %v223 = vadd.f32 %v221, %v222
        %p224 = scmp.eq.s32.totalorder %s17, 0
        // Predicated region
        $region48: #{_mask_generator_forward.2} parent=42 // pred_check
          %p225 = pneg %p224
        $region49: #{_mask_generator_forward.2} parent=42 // pred_check_branch
          %227 = sbr.rel (%p225) target = $region51
        $region50: #{_mask_generator_forward.2} parent=42 // pred_region
          %vm228 = vcmask 1040384
          %v229 = vsel %vm228, %v177, %v200
          %v230 = vsel %vm228, %v184, %v201
          %vm231 = vcmask 1041408
          %v232 = vsel %vm231, %v229, %v216
          %v233 = vsel %vm231, %v230, %v223
          %v236 = vcombine.low %v232, %v233
          %238 = vst [vmem:[%s161] sm:$0x77] %v236
        $region51: #{_mask_generator_forward.2} parent=42 // pred_fallthru
          _
        %p239 = scmp.ne.s32.totalorder %s17, 0
        // Predicated region
        $region52: #{_mask_generator_forward.2} parent=42 // pred_check
          %p240 = pneg %p239
        $region53: #{_mask_generator_forward.2} parent=42 // pred_check_branch
          %242 = sbr.rel (%p240) target = $region55
        $region54: #{_mask_generator_forward.2} parent=42 // pred_region
          %v243 = vld [vmem:[%s161] sm:$0x77]
          %s244 = smul.u32 %s17, 16
          %s245 = scvt.s32.f32 %s244
          %s246 = sadd.f32 %s245, 16.0
          %v247 = vstv %s246
          %v248 = vrcp.pop %v247
          %s249 = vtos %v248
          %s250 = smul.f32 16.0, %s249
          %v252 = vlaneseq
          %v253 = vshrl.u32 %v252, 7
          %v254 = vsub.s32 1, %v253
          %v255 = vrot.slane %v243, %v254
          %v256 = vlaneseq
          %v257 = vshrl.u32 %v256, 7
          %v258 = vsub.s32 5, %v257
          %v259 = vrot.slane %v243, %v258
          %v262 = vsub.f32 %v200, %v255
          %v263 = vsub.f32 %v201, %v259
          %v266 = vcombine.low %v177, %v184
          %v268 = vadd.f32 %v243, %v266
          %v269 = vstv %s250
          %v270 = vmul.f32 %v262, %v269
          %v271 = vmul.f32 %v263, %v269
          %v274 = vcombine.low %v270, %v271
          %v275 = vrot.slane %v274, 7
          %v277 = vadd.f32 %v243, %v275
          %v280 = vcombine.low %v216, %v223
          %v281 = vrot.slane %v280, 6
          %v283 = vadd.f32 %v243, %v281
          %v284 = vmul.f32 %v262, %v262
          %v285 = vmul.f32 %v263, %v263
          %s286 = smul.f32 %s245, %s250
          %v287 = vstv %s286
          %v288 = vmul.f32 %v284, %v287
          %v289 = vmul.f32 %v285, %v287
          %v292 = vcombine.low %v288, %v289
          %v293 = vrot.slane %v292, 6
          %v295 = vadd.f32 %v283, %v293
          %v297 = vlaneseq
          %v298 = vshrl.u32 %v297, 7
          %v299 = vsub.s32 0, %v298
          %v300 = vrot.slane %v268, %v299
          %v301 = vlaneseq
          %v302 = vshrl.u32 %v301, 7
          %v303 = vsub.s32 4, %v302
          %v304 = vrot.slane %v268, %v303
          %v308 = vlaneseq
          %v309 = vshrl.u32 %v308, 7
          %v310 = vsub.s32 1, %v309
          %v311 = vrot.slane %v277, %v310
          %v312 = vlaneseq
          %v313 = vshrl.u32 %v312, 7
          %v314 = vsub.s32 5, %v313
          %v315 = vrot.slane %v277, %v314
          %v319 = vlaneseq
          %v320 = vshrl.u32 %v319, 7
          %v321 = vsub.s32 2, %v320
          %v322 = vrot.slane %v295, %v321
          %v323 = vlaneseq
          %v324 = vshrl.u32 %v323, 7
          %v325 = vsub.s32 6, %v324
          %v326 = vrot.slane %v295, %v325
          %vm329 = vcmask 1040384
          %v330 = vsel %vm329, %v300, %v311
          %v331 = vsel %vm329, %v304, %v315
          %vm332 = vcmask 1041408
          %v333 = vsel %vm332, %v330, %v322
          %v334 = vsel %vm332, %v331, %v326
          %v337 = vcombine.low %v333, %v334
          %339 = vst [vmem:[%s161] sm:$0x77] %v337
        $region55: #{_mask_generator_forward.2} parent=42 // pred_fallthru
          _
        %s340 = smul.u32 2, %s16
        %p341 = scmp.lt.s32.totalorder %s340, 7
        %s342 = scalar_select %p341, %s340, 7
        %s343 = smul.addr %s342, 4
        %s344 = scalar_lea.vmem %s1, %s343
        // Predicated region
        $region56: #{_mask_generator_forward.2} parent=42 // pred_check
          %p345 = pneg %p70
        $region57: #{_mask_generator_forward.2} parent=42 // pred_check_branch
          %347 = sbr.rel (%p345) target = $region59
        $region58: #{_mask_generator_forward.2} parent=42 // pred_region
          %s348 = smul.u32 2, %s16
        $region59: #{_mask_generator_forward.2} parent=42 // pred_fallthru
          _
      $region43: #{_mask_generator_forward.2} parent=5 // pred_fallthru
        _
      %p349 = scmp.le.s32.totalorder 2, %s7
      // Predicated region
      $region60: #{_mask_generator_forward.2} parent=5 // pred_check
        %p350 = pneg %p349
      $region61: #{_mask_generator_forward.2} parent=5 // pred_check_branch
        %352 = sbr.rel (%p350) target = $region63
      $region62: #{_mask_generator_forward.2} parent=5 // pred_region
        %s353 = ssub.s32 %s7, 2
        // Predicated region
        $region64: #{_mask_generator_forward.2} parent=62 // pred_check
          %p354 = pneg %p76
        $region65: #{_mask_generator_forward.2} parent=62 // pred_check_branch
          %356 = sbr.rel (%p354) target = $region67
        $region66: #{_mask_generator_forward.2} parent=62 // pred_region
          %s357 = smul.u32 2, %s18
          %p358 = scmp.lt.s32.totalorder %s357, 7
          %s359 = scalar_select %p358, %s357, 7
          %s360 = smul.addr %s359, 4
          %s361 = scalar_lea.vmem %s1, %s360
        $region67: #{_mask_generator_forward.2} parent=62 // pred_fallthru
          _
      $region63: #{_mask_generator_forward.2} parent=5 // pred_fallthru
        _
    $region6: #{_mask_generator_forward.2} parent=1 // loop_footer
      %s11 = sadd.s32 1, %s7
    $region7: #{_mask_generator_forward.2} parent=1 // loop_footer_branch
      %6 = sbr.rel target = $region3
    $region8: #{_mask_generator_forward.2} parent=1 // loop_exit
      _

// kernel: _mask_generator_forward.3
$region0: #{_mask_generator_forward.3}
  #allocation0 [shape = 'u32[]', space=smem, size = 0x4, offset = 0x4, fixed_abs, tag = 'smem constant byte address 0x4 - core index']
  #allocation1 [shape = 'u32[144,128]{1,0:T(1,128)}', space=vmem, size = 0x12000, scoped, tag = 'internal scratch']
  #allocation2 [shape = 'f32[1,1]{1,0:T(1,128)S(1)}', space=vmem, size = 0x200, scoped, tag = 'scoped memory for _mask_generator_forward.3']
  %s0 = inlined_call_operand.vmem [shape: f32[3,1024], index: 0, kind: input, shape index: {}]
  %s1 = inlined_call_operand.vmem [shape: f32[32,1024], index: 1, kind: input, shape index: {}, may-alias: {1,11}]
  %s2 = inlined_call_operand.vmem [shape: f32[1,1024], index: 2, kind: input, shape index: {}]
  %s3 = inlined_call_operand.vmem [shape: f32[96,1], index: 3, kind: input, shape index: {}]
  %s4 = inlined_call_operand.vmem [shape: f32[96,1], index: 4, kind: input, shape index: {}]
  %s5 = inlined_call_operand.vmem [shape: f32[96,1], index: 5, kind: input, shape index: {}]
  %s6 = inlined_call_operand.vmem [shape: f32[96,32], index: 6, kind: input, shape index: {}]
  %s7 = inlined_call_operand.vmem [shape: f32[96,1], index: 7, kind: input, shape index: {}]
  %s8 = inlined_call_operand.vmem [shape: f32[1,32], index: 8, kind: input, shape index: {}]
  %s9 = inlined_call_operand.<no memory space> [shape: f32[1,1], index: 9, kind: input, shape index: {}]
  %s10 = inlined_call_operand.hbm [shape: f32[1,1024], index: 10, kind: output, shape index: {0}]
  %s11 = inlined_call_operand.vmem [shape: f32[32,1024], index: 11, kind: output, shape index: {1}, may-alias: {1,11}]
  %s12 = inlined_call_operand.vmem [shape: f32[1,1024], index: 12, kind: output, shape index: {2}]
  %13 = xla_tuple %s10, %s11, %s12
  %s14 = sld [smem:[#allocation0]]
  $region131: #{_mask_generator_forward.3} parent=0
    _
  %s16 = ssub.s32 1, %s14
  %s17 = scalar_select 0, %s16, %s14
  %v18 = vstv %s9
  %19 = vst [vmem:[#allocation2] sm:$0x1] %v18
  $region1: #{_mask_generator_forward.3} parent=0
    #allocation3 [shape = 'u8[65536]{0}', space=vmem, size = 0x10000, scoped, tag = 'input window, operand 1']
    #allocation4 [shape = 'u8[2048]{0}', space=vmem, size = 0x800, scoped, tag = 'output window, operand 0']
    #allocation5 [shape = 's32[2]{0}', space=sflag, size = 0x8, scoped, tag = 'scoped memory for _mask_generator_forward.3']
    #allocation6 [shape = 'u8[65536]{0}', space=vmem, size = 0x10000, scoped, tag = 'output window, operand 1']
    %20 = vsyncpa [#allocation5], 0
    %s21 = scalar_lea.sflag [#allocation5], 1
    %22 = vsyncpa %s21, 0
    loop: start=0, step=1, limit=6
    $region2: #{_mask_generator_forward.3} parent=1 // loop_pre_header
      _
    $region3: #{_mask_generator_forward.3} parent=1 // loop_header
      %s24 = sphi 0, %s28
      %p25 = scmp.ge.s32.totalorder %s24, 6
      %s34 = sphi 0, %s36
      %s37 = sphi 0, %s34
      %s38 = sphi 0, %s37
      %s54 = sphi 0, %s38
      %s60 = sphi 0, %s62
      %s63 = sphi 0, %s60
      %s64 = sphi 0, %s63
      %s80 = sphi 0, %s64
      %s86 = sphi 0, %s88
      %s89 = sphi 0, %s86
      %s90 = sphi 0, %s89
      %s106 = sphi 0, %s90
      %s110 = sphi 0, %s110
      %s112 = sphi 0, %s110
      %s113 = sphi 0, %s112
      %s127 = sphi 0, %s113
      %s131 = sphi 0, %s131
      %s133 = sphi 0, %s131
      %s134 = sphi 0, %s133
      %s148 = sphi 0, %s134
      %s152 = sphi 0, %s152
      %s154 = sphi 0, %s152
      %s155 = sphi 0, %s154
      %s169 = sphi 0, %s155
      %s173 = sphi 0, %s173
      %s175 = sphi 0, %s173
      %s176 = sphi 0, %s175
      %s190 = sphi 0, %s176
      %s194 = sphi 0, %s194
      %s196 = sphi 0, %s194
      %s197 = sphi 0, %s196
      %s211 = sphi 0, %s197
      %s215 = sphi 0, %s215
      %s217 = sphi 0, %s215
      %s218 = sphi 0, %s217
      %s232 = sphi 0, %s218
      %s236 = sphi 0, %s236
      %s238 = sphi 0, %s236
      %s239 = sphi 0, %s238
      %s253 = sphi 0, %s239
      %s259 = sphi 0, %s261
      %s262 = sphi 0, %s259
      %s263 = sphi 0, %s262
      %s279 = sphi 0, %s263
      %s285 = sphi 0, %s287
      %s288 = sphi 0, %s285
      %s289 = sphi 0, %s288
      %s305 = sphi 0, %s289
      %s311 = sphi 0, %s313
      %s314 = sphi 0, %s311
      %s315 = sphi 0, %s314
      %s331 = sphi 0, %s315
    $region4: #{_mask_generator_forward.3} parent=1 // loop_header_branch
      %27 = sbr.rel (%p25) target = $region8
    $region5: #{_mask_generator_forward.3} parent=1 // loop_body
      %s29 = ssub.s32 %s24, 1
      %s30 = ssub.s32 %s24, 2
      %s31 = sadd.s32 %s24, 1
      %s32 = ssub.s32 %s24, %s31
      %p33 = scmp.eq.s32.totalorder %s32, 0
      %s35 = sadd.s32 %s34, 1
      %s36 = scalar_select %p33, %s34, %s35
      %p39 = pneg %p33
      %p40 = scmp.eq.s32.totalorder %s24, 3
      %p41 = por %p39, %p40
      %p42 = scmp.ne.s32.totalorder %s34, %s37
      %p43 = scmp.eq.s32.totalorder %s24, 0
      %p44 = por %p42, %p43
      %p45 = scmp.ne.s32.totalorder %s34, %s37
      %p46 = scmp.eq.s32.totalorder %s29, 3
      %p47 = por %p45, %p46
      %p48 = scmp.ne.s32.totalorder %s37, %s38
      %p49 = scmp.eq.s32.totalorder %s29, 0
      %p50 = por %p48, %p49
      %p51 = scmp.ne.s32.totalorder %s37, %s38
      %p52 = scmp.eq.s32.totalorder %s30, 3
      %p53 = por %p51, %p52
      %p55 = scmp.ne.s32.totalorder %s38, %s54
      %p56 = scmp.eq.s32.totalorder %s30, 0
      %p57 = por %p55, %p56
      %s58 = ssub.s32 %s24, %s31
      %p59 = scmp.eq.s32.totalorder %s58, 0
      %s61 = sadd.s32 %s60, 1
      %s62 = scalar_select %p59, %s60, %s61
      %p65 = pneg %p59
      %p66 = scmp.eq.s32.totalorder %s24, 3
      %p67 = por %p65, %p66
      %p68 = scmp.ne.s32.totalorder %s60, %s63
      %p69 = scmp.eq.s32.totalorder %s24, 0
      %p70 = por %p68, %p69
      %p71 = scmp.ne.s32.totalorder %s60, %s63
      %p72 = scmp.eq.s32.totalorder %s29, 3
      %p73 = por %p71, %p72
      %p74 = scmp.ne.s32.totalorder %s63, %s64
      %p75 = scmp.eq.s32.totalorder %s29, 0
      %p76 = por %p74, %p75
      %p77 = scmp.ne.s32.totalorder %s63, %s64
      %p78 = scmp.eq.s32.totalorder %s30, 3
      %p79 = por %p77, %p78
      %p81 = scmp.ne.s32.totalorder %s64, %s80
      %p82 = scmp.eq.s32.totalorder %s30, 0
      %p83 = por %p81, %p82
      %s84 = ssub.s32 %s24, %s31
      %p85 = scmp.eq.s32.totalorder %s84, 0
      %s87 = sadd.s32 %s86, 1
      %s88 = scalar_select %p85, %s86, %s87
      %p91 = pneg %p85
      %p92 = scmp.eq.s32.totalorder %s24, 3
      %p93 = por %p91, %p92
      %p94 = scmp.ne.s32.totalorder %s86, %s89
      %p95 = scmp.eq.s32.totalorder %s24, 0
      %p96 = por %p94, %p95
      %p97 = scmp.ne.s32.totalorder %s86, %s89
      %p98 = scmp.eq.s32.totalorder %s29, 3
      %p99 = por %p97, %p98
      %p100 = scmp.ne.s32.totalorder %s89, %s90
      %p101 = scmp.eq.s32.totalorder %s29, 0
      %p102 = por %p100, %p101
      %p103 = scmp.ne.s32.totalorder %s89, %s90
      %p104 = scmp.eq.s32.totalorder %s30, 3
      %p105 = por %p103, %p104
      %p107 = scmp.ne.s32.totalorder %s90, %s106
      %p108 = scmp.eq.s32.totalorder %s30, 0
      %p109 = por %p107, %p108
      %s111 = sadd.s32 %s110, 1
      %p114 = scmp.eq.s32.totalorder %s24, 3
      %p115 = scmp.ne.s32.totalorder %s110, %s112
      %p116 = scmp.eq.s32.totalorder %s24, 0
      %p117 = por %p115, %p116
      %p118 = scmp.ne.s32.totalorder %s110, %s112
      %p119 = scmp.eq.s32.totalorder %s29, 3
      %p120 = por %p118, %p119
      %p121 = scmp.ne.s32.totalorder %s112, %s113
      %p122 = scmp.eq.s32.totalorder %s29, 0
      %p123 = por %p121, %p122
      %p124 = scmp.ne.s32.totalorder %s112, %s113
      %p125 = scmp.eq.s32.totalorder %s30, 3
      %p126 = por %p124, %p125
      %p128 = scmp.ne.s32.totalorder %s113, %s127
      %p129 = scmp.eq.s32.totalorder %s30, 0
      %p130 = por %p128, %p129
      %s132 = sadd.s32 %s131, 1
      %p135 = scmp.eq.s32.totalorder %s24, 3
      %p136 = scmp.ne.s32.totalorder %s131, %s133
      %p137 = scmp.eq.s32.totalorder %s24, 0
      %p138 = por %p136, %p137
      %p139 = scmp.ne.s32.totalorder %s131, %s133
      %p140 = scmp.eq.s32.totalorder %s29, 3
      %p141 = por %p139, %p140
      %p142 = scmp.ne.s32.totalorder %s133, %s134
      %p143 = scmp.eq.s32.totalorder %s29, 0
      %p144 = por %p142, %p143
      %p145 = scmp.ne.s32.totalorder %s133, %s134
      %p146 = scmp.eq.s32.totalorder %s30, 3
      %p147 = por %p145, %p146
      %p149 = scmp.ne.s32.totalorder %s134, %s148
      %p150 = scmp.eq.s32.totalorder %s30, 0
      %p151 = por %p149, %p150
      %s153 = sadd.s32 %s152, 1
      %p156 = scmp.eq.s32.totalorder %s24, 3
      %p157 = scmp.ne.s32.totalorder %s152, %s154
      %p158 = scmp.eq.s32.totalorder %s24, 0
      %p159 = por %p157, %p158
      %p160 = scmp.ne.s32.totalorder %s152, %s154
      %p161 = scmp.eq.s32.totalorder %s29, 3
      %p162 = por %p160, %p161
      %p163 = scmp.ne.s32.totalorder %s154, %s155
      %p164 = scmp.eq.s32.totalorder %s29, 0
      %p165 = por %p163, %p164
      %p166 = scmp.ne.s32.totalorder %s154, %s155
      %p167 = scmp.eq.s32.totalorder %s30, 3
      %p168 = por %p166, %p167
      %p170 = scmp.ne.s32.totalorder %s155, %s169
      %p171 = scmp.eq.s32.totalorder %s30, 0
      %p172 = por %p170, %p171
      %s174 = sadd.s32 %s173, 1
      %p177 = scmp.eq.s32.totalorder %s24, 3
      %p178 = scmp.ne.s32.totalorder %s173, %s175
      %p179 = scmp.eq.s32.totalorder %s24, 0
      %p180 = por %p178, %p179
      %p181 = scmp.ne.s32.totalorder %s173, %s175
      %p182 = scmp.eq.s32.totalorder %s29, 3
      %p183 = por %p181, %p182
      %p184 = scmp.ne.s32.totalorder %s175, %s176
      %p185 = scmp.eq.s32.totalorder %s29, 0
      %p186 = por %p184, %p185
      %p187 = scmp.ne.s32.totalorder %s175, %s176
      %p188 = scmp.eq.s32.totalorder %s30, 3
      %p189 = por %p187, %p188
      %p191 = scmp.ne.s32.totalorder %s176, %s190
      %p192 = scmp.eq.s32.totalorder %s30, 0
      %p193 = por %p191, %p192
      %s195 = sadd.s32 %s194, 1
      %p198 = scmp.eq.s32.totalorder %s24, 3
      %p199 = scmp.ne.s32.totalorder %s194, %s196
      %p200 = scmp.eq.s32.totalorder %s24, 0
      %p201 = por %p199, %p200
      %p202 = scmp.ne.s32.totalorder %s194, %s196
      %p203 = scmp.eq.s32.totalorder %s29, 3
      %p204 = por %p202, %p203
      %p205 = scmp.ne.s32.totalorder %s196, %s197
      %p206 = scmp.eq.s32.totalorder %s29, 0
      %p207 = por %p205, %p206
      %p208 = scmp.ne.s32.totalorder %s196, %s197
      %p209 = scmp.eq.s32.totalorder %s30, 3
      %p210 = por %p208, %p209
      %p212 = scmp.ne.s32.totalorder %s197, %s211
      %p213 = scmp.eq.s32.totalorder %s30, 0
      %p214 = por %p212, %p213
      %s216 = sadd.s32 %s215, 1
      %p219 = scmp.eq.s32.totalorder %s24, 3
      %p220 = scmp.ne.s32.totalorder %s215, %s217
      %p221 = scmp.eq.s32.totalorder %s24, 0
      %p222 = por %p220, %p221
      %p223 = scmp.ne.s32.totalorder %s215, %s217
      %p224 = scmp.eq.s32.totalorder %s29, 3
      %p225 = por %p223, %p224
      %p226 = scmp.ne.s32.totalorder %s217, %s218
      %p227 = scmp.eq.s32.totalorder %s29, 0
      %p228 = por %p226, %p227
      %p229 = scmp.ne.s32.totalorder %s217, %s218
      %p230 = scmp.eq.s32.totalorder %s30, 3
      %p231 = por %p229, %p230
      %p233 = scmp.ne.s32.totalorder %s218, %s232
      %p234 = scmp.eq.s32.totalorder %s30, 0
      %p235 = por %p233, %p234
      %s237 = sadd.s32 %s236, 1
      %p240 = scmp.eq.s32.totalorder %s24, 3
      %p241 = scmp.ne.s32.totalorder %s236, %s238
      %p242 = scmp.eq.s32.totalorder %s24, 0
      %p243 = por %p241, %p242
      %p244 = scmp.ne.s32.totalorder %s236, %s238
      %p245 = scmp.eq.s32.totalorder %s29, 3
      %p246 = por %p244, %p245
      %p247 = scmp.ne.s32.totalorder %s238, %s239
      %p248 = scmp.eq.s32.totalorder %s29, 0
      %p249 = por %p247, %p248
      %p250 = scmp.ne.s32.totalorder %s238, %s239
      %p251 = scmp.eq.s32.totalorder %s30, 3
      %p252 = por %p250, %p251
      %p254 = scmp.ne.s32.totalorder %s239, %s253
      %p255 = scmp.eq.s32.totalorder %s30, 0
      %p256 = por %p254, %p255
      %s257 = ssub.s32 %s24, %s31
      %p258 = scmp.eq.s32.totalorder %s257, 0
      %s260 = sadd.s32 %s259, 1
      %s261 = scalar_select %p258, %s259, %s260
      %p264 = pneg %p258
      %p265 = scmp.eq.s32.totalorder %s24, 3
      %p266 = por %p264, %p265
      %p267 = scmp.ne.s32.totalorder %s259, %s262
      %p268 = scmp.eq.s32.totalorder %s24, 0
      %p269 = por %p267, %p268
      %p270 = scmp.ne.s32.totalorder %s259, %s262
      %p271 = scmp.eq.s32.totalorder %s29, 3
      %p272 = por %p270, %p271
      %p273 = scmp.ne.s32.totalorder %s262, %s263
      %p274 = scmp.eq.s32.totalorder %s29, 0
      %p275 = por %p273, %p274
      %p276 = scmp.ne.s32.totalorder %s262, %s263
      %p277 = scmp.eq.s32.totalorder %s30, 3
      %p278 = por %p276, %p277
      %p280 = scmp.ne.s32.totalorder %s263, %s279
      %p281 = scmp.eq.s32.totalorder %s30, 0
      %p282 = por %p280, %p281
      %s283 = ssub.s32 %s24, %s31
      %p284 = scmp.eq.s32.totalorder %s283, 0
      %s286 = sadd.s32 %s285, 1
      %s287 = scalar_select %p284, %s285, %s286
      %p290 = pneg %p284
      %p291 = scmp.eq.s32.totalorder %s24, 3
      %p292 = por %p290, %p291
      %p293 = scmp.ne.s32.totalorder %s285, %s288
      %p294 = scmp.eq.s32.totalorder %s24, 0
      %p295 = por %p293, %p294
      %p296 = scmp.ne.s32.totalorder %s285, %s288
      %p297 = scmp.eq.s32.totalorder %s29, 3
      %p298 = por %p296, %p297
      %p299 = scmp.ne.s32.totalorder %s288, %s289
      %p300 = scmp.eq.s32.totalorder %s29, 0
      %p301 = por %p299, %p300
      %p302 = scmp.ne.s32.totalorder %s288, %s289
      %p303 = scmp.eq.s32.totalorder %s30, 3
      %p304 = por %p302, %p303
      %p306 = scmp.ne.s32.totalorder %s289, %s305
      %p307 = scmp.eq.s32.totalorder %s30, 0
      %p308 = por %p306, %p307
      %s309 = ssub.s32 %s24, %s31
      %p310 = scmp.eq.s32.totalorder %s309, 0
      %s312 = sadd.s32 %s311, 1
      %s313 = scalar_select %p310, %s311, %s312
      %p316 = pneg %p310
      %p317 = scmp.eq.s32.totalorder %s24, 3
      %p318 = por %p316, %p317
      %p319 = scmp.ne.s32.totalorder %s311, %s314
      %p320 = scmp.eq.s32.totalorder %s24, 0
      %p321 = por %p319, %p320
      %p322 = scmp.ne.s32.totalorder %s311, %s314
      %p323 = scmp.eq.s32.totalorder %s29, 3
      %p324 = por %p322, %p323
      %p325 = scmp.ne.s32.totalorder %s314, %s315
      %p326 = scmp.eq.s32.totalorder %s29, 0
      %p327 = por %p325, %p326
      %p328 = scmp.ne.s32.totalorder %s314, %s315
      %p329 = scmp.eq.s32.totalorder %s30, 3
      %p330 = por %p328, %p329
      %p332 = scmp.ne.s32.totalorder %s315, %s331
      %p333 = scmp.eq.s32.totalorder %s30, 0
      %p334 = por %p332, %p333
      %p335 = scmp.le.s32.totalorder 1, %s24
      %p336 = scmp.lt.s32.totalorder %s24, 5
      %p337 = pnand %p335, %p336
      %p338 = pneg %p337
      // Predicated region
      $region9: #{_mask_generator_forward.3} parent=5 // pred_check
        _
      $region10: #{_mask_generator_forward.3} parent=5 // pred_check_branch
        %340 = sbr.rel (%p337) target = $region12
      $region11: #{_mask_generator_forward.3} parent=5 // pred_region
        %s341 = ssub.s32 %s24, 1
        // Predicated region
        $region13: #{_mask_generator_forward.3} parent=11 // pred_check
          %p342 = pneg %p123
        $region14: #{_mask_generator_forward.3} parent=11 // pred_check_branch
          %344 = sbr.rel (%p342) target = $region16
        $region15: #{_mask_generator_forward.3} parent=11 // pred_region
          _
        $region16: #{_mask_generator_forward.3} parent=11 // pred_fallthru
          _
        // Predicated region
        $region17: #{_mask_generator_forward.3} parent=11 // pred_check
          %p345 = pneg %p144
        $region18: #{_mask_generator_forward.3} parent=11 // pred_check_branch
          %347 = sbr.rel (%p345) target = $region20
        $region19: #{_mask_generator_forward.3} parent=11 // pred_region
          _
        $region20: #{_mask_generator_forward.3} parent=11 // pred_fallthru
          _
        // Predicated region
        $region21: #{_mask_generator_forward.3} parent=11 // pred_check
          %p348 = pneg %p165
        $region22: #{_mask_generator_forward.3} parent=11 // pred_check_branch
          %350 = sbr.rel (%p348) target = $region24
        $region23: #{_mask_generator_forward.3} parent=11 // pred_region
          _
        $region24: #{_mask_generator_forward.3} parent=11 // pred_fallthru
          _
        // Predicated region
        $region25: #{_mask_generator_forward.3} parent=11 // pred_check
          %p351 = pneg %p186
        $region26: #{_mask_generator_forward.3} parent=11 // pred_check_branch
          %353 = sbr.rel (%p351) target = $region28
        $region27: #{_mask_generator_forward.3} parent=11 // pred_region
          _
        $region28: #{_mask_generator_forward.3} parent=11 // pred_fallthru
          _
        // Predicated region
        $region29: #{_mask_generator_forward.3} parent=11 // pred_check
          %p354 = pneg %p207
        $region30: #{_mask_generator_forward.3} parent=11 // pred_check_branch
          %356 = sbr.rel (%p354) target = $region32
        $region31: #{_mask_generator_forward.3} parent=11 // pred_region
          _
        $region32: #{_mask_generator_forward.3} parent=11 // pred_fallthru
          _
        // Predicated region
        $region33: #{_mask_generator_forward.3} parent=11 // pred_check
          %p357 = pneg %p228
        $region34: #{_mask_generator_forward.3} parent=11 // pred_check_branch
          %359 = sbr.rel (%p357) target = $region36
        $region35: #{_mask_generator_forward.3} parent=11 // pred_region
          _
        $region36: #{_mask_generator_forward.3} parent=11 // pred_fallthru
          _
        // Predicated region
        $region37: #{_mask_generator_forward.3} parent=11 // pred_check
          %p360 = pneg %p249
        $region38: #{_mask_generator_forward.3} parent=11 // pred_check_branch
          %362 = sbr.rel (%p360) target = $region40
        $region39: #{_mask_generator_forward.3} parent=11 // pred_region
          _
        $region40: #{_mask_generator_forward.3} parent=11 // pred_fallthru
          _
      $region12: #{_mask_generator_forward.3} parent=5 // pred_fallthru
        _
      %p363 = scmp.lt.s32.totalorder %s24, 4
      // Predicated region
      $region41: #{_mask_generator_forward.3} parent=5 // pred_check
        %p364 = pneg %p363
      $region42: #{_mask_generator_forward.3} parent=5 // pred_check_branch
        %366 = sbr.rel (%p364) target = $region44
      $region43: #{_mask_generator_forward.3} parent=5 // pred_region
        // Predicated region
        $region45: #{_mask_generator_forward.3} parent=43 // pred_check
          %p367 = pneg %p44
        $region46: #{_mask_generator_forward.3} parent=43 // pred_check_branch
          %369 = sbr.rel (%p367) target = $region48
        $region47: #{_mask_generator_forward.3} parent=43 // pred_region
          %s370 = smul.u32 2, %s24
          %p371 = scmp.lt.s32.totalorder %s370, 7
          %s372 = scalar_select %p371, %s370, 7
          %s373 = smul.addr %s372, 4
          %s374 = scalar_lea.vmem %s0, %s373
          %s375 = smul.u32 2, %s24
        $region48: #{_mask_generator_forward.3} parent=43 // pred_fallthru
          _
        // Predicated region
        $region49: #{_mask_generator_forward.3} parent=43 // pred_check
          %p376 = pneg %p70
        $region50: #{_mask_generator_forward.3} parent=43 // pred_check_branch
          %378 = sbr.rel (%p376) target = $region52
        $region51: #{_mask_generator_forward.3} parent=43 // pred_region
          %s379 = sand.u32 %s60, 1
          %s380 = sand.u32 %s60, 1
          %s381 = smul.addr %s380, 64
          %s382 = scalar_lea.vmem [#allocation3], %s381
          %s383 = smul.u32 2, %s24
          %s384 = smul.addr %s383, 8
          %s385 = scalar_lea.vmem %s1, %s384
          // Predicated region
          $region53: #{_mask_generator_forward.3} parent=51 // pred_check
            _
          $region54: #{_mask_generator_forward.3} parent=51 // pred_check_branch
            %387 = sbr.rel (0) target = $region56
          $region55: #{_mask_generator_forward.3} parent=51 // pred_region
            // Predicated region
            $region57: #{_mask_generator_forward.3} parent=55 // pred_check
              _
            $region58: #{_mask_generator_forward.3} parent=55 // pred_check_branch
              %389 = sbr.rel (0) target = $region60
            $region59: #{_mask_generator_forward.3} parent=55 // pred_region
              loop: start=0, step=1, limit=1
              $region61: #{_mask_generator_forward.3} parent=59 // loop_pre_header
                _
              $region62: #{_mask_generator_forward.3} parent=59 // loop_header
                %s391 = sphi 0, %s395
                %p392 = scmp.ge.s32.totalorder %s391, 1
                %s396 = sphi %s385, %s385
                %s397 = sphi %s382, %s382
              $region63: #{_mask_generator_forward.3} parent=59 // loop_header_branch
                %394 = sbr.rel (%p392) target = $region67
              $region64: #{_mask_generator_forward.3} parent=59 // loop_body
                %v398 = vld [vmem:[%s396] sm:$0xff]
                %399 = vst [vmem:[%s397] sm:$0xff] %v398
                %v400 = vld [vmem:[%s396 + $0x8] sm:$0xff]
                %401 = vst [vmem:[%s397 + $0x8] sm:$0xff] %v400
                %v402 = vld [vmem:[%s396 + $0x40] sm:$0xff]
                %403 = vst [vmem:[%s397 + $0x10] sm:$0xff] %v402
                %v404 = vld [vmem:[%s396 + $0x48] sm:$0xff]
                %405 = vst [vmem:[%s397 + $0x18] sm:$0xff] %v404
                %v406 = vld [vmem:[%s396 + $0x80] sm:$0xff]
                %407 = vst [vmem:[%s397 + $0x20] sm:$0xff] %v406
                %v408 = vld [vmem:[%s396 + $0x88] sm:$0xff]
                %409 = vst [vmem:[%s397 + $0x28] sm:$0xff] %v408
                %v410 = vld [vmem:[%s396 + $0xc0] sm:$0xff]
                %411 = vst [vmem:[%s397 + $0x30] sm:$0xff] %v410
                %v412 = vld [vmem:[%s396 + $0xc8] sm:$0xff]
                %413 = vst [vmem:[%s397 + $0x38] sm:$0xff] %v412
              $region65: #{_mask_generator_forward.3} parent=59 // loop_footer
                %s395 = sadd.s32 1, %s391
              $region66: #{_mask_generator_forward.3} parent=59 // loop_footer_branch
                %390 = sbr.rel target = $region62
              $region67: #{_mask_generator_forward.3} parent=59 // loop_exit
                _
            $region60: #{_mask_generator_forward.3} parent=55 // pred_fallthru
              _
            // Predicated region
            $region68: #{_mask_generator_forward.3} parent=55 // pred_check
              _
            $region69: #{_mask_generator_forward.3} parent=55 // pred_check_branch
              %415 = sbr.rel target = $region71
            $region70: #{_mask_generator_forward.3} parent=55 // pred_region
              _
            $region71: #{_mask_generator_forward.3} parent=55 // pred_fallthru
              _
          $region56: #{_mask_generator_forward.3} parent=51 // pred_fallthru
            _
          %416 = vnop
        $region52: #{_mask_generator_forward.3} parent=43 // pred_fallthru
          _
        // Predicated region
        $region72: #{_mask_generator_forward.3} parent=43 // pred_check
          %p417 = pneg %p96
        $region73: #{_mask_generator_forward.3} parent=43 // pred_check_branch
          %419 = sbr.rel (%p417) target = $region75
        $region74: #{_mask_generator_forward.3} parent=43 // pred_region
          %s420 = smul.u32 2, %s24
          %p421 = scmp.lt.s32.totalorder %s420, 7
          %s422 = scalar_select %p421, %s420, 7
          %s423 = scalar_lea.vmem %s2, %s422
          %s424 = smul.u32 2, %s24
        $region75: #{_mask_generator_forward.3} parent=43 // pred_fallthru
          _
      $region44: #{_mask_generator_forward.3} parent=5 // pred_fallthru
        _
      %p425 = scmp.le.s32.totalorder 1, %s24
      %p426 = scmp.lt.s32.totalorder %s24, 5
      %p427 = pnand %p425, %p426
      %p428 = pneg %p427
      // Predicated region
      $region76: #{_mask_generator_forward.3} parent=5 // pred_check
        _
      $region77: #{_mask_generator_forward.3} parent=5 // pred_check_branch
        %430 = sbr.rel (%p427) target = $region79
      $region78: #{_mask_generator_forward.3} parent=5 // pred_region
        %s431 = ssub.s32 %s24, 1
        %s432 = sand.u32 %s63, 1
        %s433 = sand.u32 %s63, 1
        %s434 = smul.addr %s433, 64
        %s435 = scalar_lea.vmem [#allocation3], %s434
        // Predicated region
        $region80: #{_mask_generator_forward.3} parent=78 // pred_check
          %p436 = pneg %p76
        $region81: #{_mask_generator_forward.3} parent=78 // pred_check_branch
          %438 = sbr.rel (%p436) target = $region83
        $region82: #{_mask_generator_forward.3} parent=78 // pred_region
          _
        $region83: #{_mask_generator_forward.3} parent=78 // pred_fallthru
          _
        %s439 = smul.u32 2, %s29
        %p440 = scmp.lt.s32.totalorder %s439, 7
        %s441 = scalar_select %p440, %s439, 7
        %s442 = smul.addr %s441, 4
        %s443 = scalar_lea.vmem %s0, %s442
        %p444 = pneg %p50
        %p445 = pneg %p47
        %s446 = sand.u32 %s63, 1
        %s447 = sand.u32 %s63, 1
        %s448 = smul.addr %s447, 64
        %s449 = scalar_lea.vmem [#allocation3], %s448
        %p450 = pneg %p76
        %p451 = pneg %p73
        %s452 = smul.u32 2, %s29
        %p453 = scmp.lt.s32.totalorder %s452, 7
        %s454 = scalar_select %p453, %s452, 7
        %s455 = scalar_lea.vmem %s2, %s454
        %p456 = pneg %p102
        %p457 = pneg %p99
        %p458 = pneg %p123
        %p459 = pneg %p120
        %p460 = pneg %p144
        %p461 = pneg %p141
        %p462 = pneg %p165
        %p463 = pneg %p162
        %p464 = pneg %p186
        %p465 = pneg %p183
        %p466 = pneg %p207
        %p467 = pneg %p204
        %p468 = pneg %p228
        %p469 = pneg %p225
        %p470 = pneg %p249
        %p471 = pneg %p246
        %p472 = pneg %p275
        %p473 = pneg %p272
        %s474 = sand.u32 %s262, 1
        %s475 = scalar_lea.sflag [#allocation5], %s474
        %s476 = sand.u32 %s262, 1
        %s477 = smul.addr %s476, 2
        %s478 = scalar_lea.vmem [#allocation4], %s477
        %p479 = pneg %p301
        %p480 = pneg %p298
        %s481 = sand.u32 %s288, 1
        %s482 = sand.u32 %s288, 1
        %s483 = smul.addr %s482, 64
        %s484 = scalar_lea.vmem [#allocation6], %s483
        %p485 = pneg %p327
        %p486 = pneg %p324
        %s487 = smul.u32 2, %s29
        %p488 = scmp.lt.s32.totalorder %s487, 7
        %s489 = scalar_select %p488, %s487, 7
        %s490 = scalar_lea.vmem %s12, %s489
        %s491 = smul.u32 2, %s29
        %p492 = scmp.lt.s32.totalorder %s491, 7
        %s493 = scalar_select %p492, %s491, 7
        %s494 = smul.addr %s493, 4
        %s495 = scalar_lea.vmem %s0, %s494
        %s496 = smul.u32 2, %s29
        %s497 = smul.u32 2, %s29
        %s498 = smul.u32 2, %s29
        %p499 = scmp.lt.s32.totalorder %s498, 7
        %s500 = scalar_select %p499, %s498, 7
        %s501 = scalar_lea.vmem %s2, %s500
        %s502 = smul.u32 2, %s29
        %s503 = smul.u32 2, %s29
        %s504 = smul.u32 2, %s29
        %s505 = smul.u32 2, %s29
        %p506 = scmp.lt.s32.totalorder %s505, 7
        %s507 = scalar_select %p506, %s505, 7
        %s508 = scalar_lea.vmem %s12, %s507
        %s509 = smul.u32 2, %s29
        %v510 = vld [vmem:[%s495] sm:$0x77]
        %v511 = vmul.f32 %v510, 0.03125
        %v512 = vmul.f32 %v510, 0.032258064
        %v513 = vmax.f32 %v512, 0.0
        %v514 = vrsqrt.pop %v513
        %v515 = vmul.f32 %v513, %v514
        %vm516 = vcmp.eq.f32.partialorder %v513, inf
        %v517 = vsel %vm516, %v513, %v515
        %vm518 = vcmp.eq.f32.partialorder %v513, 0.0
        %v519 = vand.u32 %v513, 2147483648
        %v520 = vsel %vm518, %v519, %v517
        %v521 = vld [vmem:[%s3] sm:$0xff]
        %v522 = vld [vmem:[%s3 + $0x8] sm:$0xff]
        %v523 = vld [vmem:[%s3 + $0x10] sm:$0xff]
        %v524 = vld [vmem:[%s3 + $0x18] sm:$0xff]
        %v525 = vld [vmem:[%s3 + $0x20] sm:$0xff]
        %v526 = vld [vmem:[%s3 + $0x28] sm:$0xff]
        %v527 = vld [vmem:[%s3 + $0x30] sm:$0xff]
        %v528 = vld [vmem:[%s3 + $0x38] sm:$0xff]
        %v529 = vld [vmem:[%s3 + $0x40] sm:$0xff]
        %v530 = vld [vmem:[%s3 + $0x48] sm:$0xff]
        %v531 = vld [vmem:[%s3 + $0x50] sm:$0xff]
        %v532 = vld [vmem:[%s3 + $0x58] sm:$0xff]
        %534 = vset.pattern.permute.xlu0 0
        %535 = vperm.xlu0 %534, %v521
        %v536 = vpop.permute.xlu0 %535
        %539 = vset.pattern.permute.xlu0 0
        %540 = vperm.xlu0 %539, %v522
        %v541 = vpop.permute.xlu0 %540
        %544 = vset.pattern.permute.xlu0 0
        %545 = vperm.xlu0 %544, %v523
        %v546 = vpop.permute.xlu0 %545
        %549 = vset.pattern.permute.xlu0 0
        %550 = vperm.xlu0 %549, %v524
        %v551 = vpop.permute.xlu0 %550
        %554 = vset.pattern.permute.xlu0 0
        %555 = vperm.xlu0 %554, %v525
        %v556 = vpop.permute.xlu0 %555
        %559 = vset.pattern.permute.xlu0 0
        %560 = vperm.xlu0 %559, %v526
        %v561 = vpop.permute.xlu0 %560
        %564 = vset.pattern.permute.xlu0 0
        %565 = vperm.xlu0 %564, %v527
        %v566 = vpop.permute.xlu0 %565
        %569 = vset.pattern.permute.xlu0 0
        %570 = vperm.xlu0 %569, %v528
        %v571 = vpop.permute.xlu0 %570
        %574 = vset.pattern.permute.xlu0 0
        %575 = vperm.xlu0 %574, %v529
        %v576 = vpop.permute.xlu0 %575
        %579 = vset.pattern.permute.xlu0 0
        %580 = vperm.xlu0 %579, %v530
        %v581 = vpop.permute.xlu0 %580
        %584 = vset.pattern.permute.xlu0 0
        %585 = vperm.xlu0 %584, %v531
        %v586 = vpop.permute.xlu0 %585
        %589 = vset.pattern.permute.xlu0 0
        %590 = vperm.xlu0 %589, %v532
        %v591 = vpop.permute.xlu0 %590
        %v594 = vlaneseq
        %v595 = vshrl.u32 %v594, 7
        %v596 = vsub.s32 0, %v595
        %v597 = vrot.slane %v511, %v596
        %v598 = vlaneseq
        %v599 = vshrl.u32 %v598, 7
        %v600 = vsub.s32 4, %v599
        %v601 = vrot.slane %v511, %v600
        %v604 = vlaneseq
        %v605 = vshrl.u32 %v604, 7
        %v606 = vsub.s32 0, %v605
        %v607 = vrot.slane %v597, %v606
        %v608 = vlaneseq
        %v609 = vshrl.u32 %v608, 7
        %v610 = vsub.s32 0, %v609
        %v611 = vrot.slane %v601, %v610
        %v612 = vmul.f32 %v536, %v607
        %v613 = vmul.f32 %v536, %v611
        %v614 = vmul.f32 %v541, %v607
        %v615 = vmul.f32 %v541, %v611
        %v616 = vmul.f32 %v546, %v607
        %v617 = vmul.f32 %v546, %v611
        %v618 = vmul.f32 %v551, %v607
        %v619 = vmul.f32 %v551, %v611
        %v620 = vmul.f32 %v556, %v607
        %v621 = vmul.f32 %v556, %v611
        %v622 = vmul.f32 %v561, %v607
        %v623 = vmul.f32 %v561, %v611
        %v624 = vmul.f32 %v566, %v607
        %v625 = vmul.f32 %v566, %v611
        %v626 = vmul.f32 %v571, %v607
        %v627 = vmul.f32 %v571, %v611
        %v628 = vmul.f32 %v576, %v607
        %v629 = vmul.f32 %v576, %v611
        %v630 = vmul.f32 %v581, %v607
        %v631 = vmul.f32 %v581, %v611
        %v632 = vmul.f32 %v586, %v607
        %v633 = vmul.f32 %v586, %v611
        %v634 = vmul.f32 %v591, %v607
        %v635 = vmul.f32 %v591, %v611
        %v636 = vld [vmem:[%s4] sm:$0xff]
        %v637 = vld [vmem:[%s4 + $0x8] sm:$0xff]
        %v638 = vld [vmem:[%s4 + $0x10] sm:$0xff]
        %v639 = vld [vmem:[%s4 + $0x18] sm:$0xff]
        %v640 = vld [vmem:[%s4 + $0x20] sm:$0xff]
        %v641 = vld [vmem:[%s4 + $0x28] sm:$0xff]
        %v642 = vld [vmem:[%s4 + $0x30] sm:$0xff]
        %v643 = vld [vmem:[%s4 + $0x38] sm:$0xff]
        %v644 = vld [vmem:[%s4 + $0x40] sm:$0xff]
        %v645 = vld [vmem:[%s4 + $0x48] sm:$0xff]
        %v646 = vld [vmem:[%s4 + $0x50] sm:$0xff]
        %v647 = vld [vmem:[%s4 + $0x58] sm:$0xff]
        %649 = vset.pattern.permute.xlu0 0
        %650 = vperm.xlu0 %649, %v636
        %v651 = vpop.permute.xlu0 %650
        %654 = vset.pattern.permute.xlu0 0
        %655 = vperm.xlu0 %654, %v637
        %v656 = vpop.permute.xlu0 %655
        %659 = vset.pattern.permute.xlu0 0
        %660 = vperm.xlu0 %659, %v638
        %v661 = vpop.permute.xlu0 %660
        %664 = vset.pattern.permute.xlu0 0
        %665 = vperm.xlu0 %664, %v639
        %v666 = vpop.permute.xlu0 %665
        %669 = vset.pattern.permute.xlu0 0
        %670 = vperm.xlu0 %669, %v640
        %v671 = vpop.permute.xlu0 %670
        %674 = vset.pattern.permute.xlu0 0
        %675 = vperm.xlu0 %674, %v641
        %v676 = vpop.permute.xlu0 %675
        %679 = vset.pattern.permute.xlu0 0
        %680 = vperm.xlu0 %679, %v642
        %v681 = vpop.permute.xlu0 %680
        %684 = vset.pattern.permute.xlu0 0
        %685 = vperm.xlu0 %684, %v643
        %v686 = vpop.permute.xlu0 %685
        %689 = vset.pattern.permute.xlu0 0
        %690 = vperm.xlu0 %689, %v644
        %v691 = vpop.permute.xlu0 %690
        %694 = vset.pattern.permute.xlu0 0
        %695 = vperm.xlu0 %694, %v645
        %v696 = vpop.permute.xlu0 %695
        %699 = vset.pattern.permute.xlu0 0
        %700 = vperm.xlu0 %699, %v646
        %v701 = vpop.permute.xlu0 %700
        %704 = vset.pattern.permute.xlu0 0
        %705 = vperm.xlu0 %704, %v647
        %v706 = vpop.permute.xlu0 %705
        %v709 = vlaneseq
        %v710 = vshrl.u32 %v709, 7
        %v711 = vsub.s32 2, %v710
        %v712 = vrot.slane %v520, %v711
        %v713 = vlaneseq
        %v714 = vshrl.u32 %v713, 7
        %v715 = vsub.s32 6, %v714
        %v716 = vrot.slane %v520, %v715
        %v719 = vlaneseq
        %v720 = vshrl.u32 %v719, 7
        %v721 = vsub.s32 2, %v720
        %v722 = vrot.slane %v712, %v721
        %v723 = vlaneseq
        %v724 = vshrl.u32 %v723, 7
        %v725 = vsub.s32 2, %v724
        %v726 = vrot.slane %v716, %v725
        %v727 = vmul.f32 %v651, %v722
        %v728 = vmul.f32 %v651, %v726
        %v729 = vmul.f32 %v656, %v722
        %v730 = vmul.f32 %v656, %v726
        %v731 = vmul.f32 %v661, %v722
        %v732 = vmul.f32 %v661, %v726
        %v733 = vmul.f32 %v666, %v722
        %v734 = vmul.f32 %v666, %v726
        %v735 = vmul.f32 %v671, %v722
        %v736 = vmul.f32 %v671, %v726
        %v737 = vmul.f32 %v676, %v722
        %v738 = vmul.f32 %v676, %v726
        %v739 = vmul.f32 %v681, %v722
        %v740 = vmul.f32 %v681, %v726
        %v741 = vmul.f32 %v686, %v722
        %v742 = vmul.f32 %v686, %v726
        %v743 = vmul.f32 %v691, %v722
        %v744 = vmul.f32 %v691, %v726
        %v745 = vmul.f32 %v696, %v722
        %v746 = vmul.f32 %v696, %v726
        %v747 = vmul.f32 %v701, %v722
        %v748 = vmul.f32 %v701, %v726
        %v749 = vmul.f32 %v706, %v722
        %v750 = vmul.f32 %v706, %v726
        %v751 = vadd.f32 %v612, %v727
        %v752 = vadd.f32 %v613, %v728
        %v753 = vadd.f32 %v614, %v729
        %v754 = vadd.f32 %v615, %v730
        %v755 = vadd.f32 %v616, %v731
        %v756 = vadd.f32 %v617, %v732
        %v757 = vadd.f32 %v618, %v733
        %v758 = vadd.f32 %v619, %v734
        %v759 = vadd.f32 %v620, %v735
        %v760 = vadd.f32 %v621, %v736
        %v761 = vadd.f32 %v622, %v737
        %v762 = vadd.f32 %v623, %v738
        %v763 = vadd.f32 %v624, %v739
        %v764 = vadd.f32 %v625, %v740
        %v765 = vadd.f32 %v626, %v741
        %v766 = vadd.f32 %v627, %v742
        %v767 = vadd.f32 %v628, %v743
        %v768 = vadd.f32 %v629, %v744
        %v769 = vadd.f32 %v630, %v745
        %v770 = vadd.f32 %v631, %v746
        %v771 = vadd.f32 %v632, %v747
        %v772 = vadd.f32 %v633, %v748
        %v773 = vadd.f32 %v634, %v749
        %v774 = vadd.f32 %v635, %v750
        %v775 = vld [vmem:[%s5] sm:$0xff]
        %v776 = vld [vmem:[%s5 + $0x8] sm:$0xff]
        %v777 = vld [vmem:[%s5 + $0x10] sm:$0xff]
        %v778 = vld [vmem:[%s5 + $0x18] sm:$0xff]
        %v779 = vld [vmem:[%s5 + $0x20] sm:$0xff]
        %v780 = vld [vmem:[%s5 + $0x28] sm:$0xff]
        %v781 = vld [vmem:[%s5 + $0x30] sm:$0xff]
        %v782 = vld [vmem:[%s5 + $0x38] sm:$0xff]
        %v783 = vld [vmem:[%s5 + $0x40] sm:$0xff]
        %v784 = vld [vmem:[%s5 + $0x48] sm:$0xff]
        %v785 = vld [vmem:[%s5 + $0x50] sm:$0xff]
        %v786 = vld [vmem:[%s5 + $0x58] sm:$0xff]
        %788 = vset.pattern.permute.xlu0 0
        %789 = vperm.xlu0 %788, %v775
        %v790 = vpop.permute.xlu0 %789
        %793 = vset.pattern.permute.xlu0 0
        %794 = vperm.xlu0 %793, %v776
        %v795 = vpop.permute.xlu0 %794
        %798 = vset.pattern.permute.xlu0 0
        %799 = vperm.xlu0 %798, %v777
        %v800 = vpop.permute.xlu0 %799
        %803 = vset.pattern.permute.xlu0 0
        %804 = vperm.xlu0 %803, %v778
        %v805 = vpop.permute.xlu0 %804
        %808 = vset.pattern.permute.xlu0 0
        %809 = vperm.xlu0 %808, %v779
        %v810 = vpop.permute.xlu0 %809
        %813 = vset.pattern.permute.xlu0 0
        %814 = vperm.xlu0 %813, %v780
        %v815 = vpop.permute.xlu0 %814
        %818 = vset.pattern.permute.xlu0 0
        %819 = vperm.xlu0 %818, %v781
        %v820 = vpop.permute.xlu0 %819
        %823 = vset.pattern.permute.xlu0 0
        %824 = vperm.xlu0 %823, %v782
        %v825 = vpop.permute.xlu0 %824
        %828 = vset.pattern.permute.xlu0 0
        %829 = vperm.xlu0 %828, %v783
        %v830 = vpop.permute.xlu0 %829
        %833 = vset.pattern.permute.xlu0 0
        %834 = vperm.xlu0 %833, %v784
        %v835 = vpop.permute.xlu0 %834
        %838 = vset.pattern.permute.xlu0 0
        %839 = vperm.xlu0 %838, %v785
        %v840 = vpop.permute.xlu0 %839
        %843 = vset.pattern.permute.xlu0 0
        %844 = vperm.xlu0 %843, %v786
        %v845 = vpop.permute.xlu0 %844
        %v847 = vadd.f32 %v751, %v790
        %v848 = vadd.f32 %v752, %v790
        %v849 = vadd.f32 %v753, %v795
        %v850 = vadd.f32 %v754, %v795
        %v851 = vadd.f32 %v755, %v800
        %v852 = vadd.f32 %v756, %v800
        %v853 = vadd.f32 %v757, %v805
        %v854 = vadd.f32 %v758, %v805
        %v855 = vadd.f32 %v759, %v810
        %v856 = vadd.f32 %v760, %v810
        %v857 = vadd.f32 %v761, %v815
        %v858 = vadd.f32 %v762, %v815
        %v859 = vadd.f32 %v763, %v820
        %v860 = vadd.f32 %v764, %v820
        %v861 = vadd.f32 %v765, %v825
        %v862 = vadd.f32 %v766, %v825
        %v863 = vadd.f32 %v767, %v830
        %v864 = vadd.f32 %v768, %v830
        %v865 = vadd.f32 %v769, %v835
        %v866 = vadd.f32 %v770, %v835
        %v867 = vadd.f32 %v771, %v840
        %v868 = vadd.f32 %v772, %v840
        %v869 = vadd.f32 %v773, %v845
        %v870 = vadd.f32 %v774, %v845
        %v871 = vld [vmem:[%s435] sm:$0xff]
        %v872 = vld [vmem:[%s435 + $0x8] sm:$0xff]
        %v873 = vld [vmem:[%s435 + $0x10] sm:$0xff]
        %v874 = vld [vmem:[%s435 + $0x18] sm:$0xff]
        %v875 = vld [vmem:[%s435 + $0x20] sm:$0xff]
        %v876 = vld [vmem:[%s435 + $0x28] sm:$0xff]
        %v877 = vld [vmem:[%s435 + $0x30] sm:$0xff]
        %v878 = vld [vmem:[%s435 + $0x38] sm:$0xff]
        %v879 = vld [vmem:[%s6] sm:$0xff]
        %v880 = vld [vmem:[%s6 + $0x8] sm:$0xff]
        %v881 = vld [vmem:[%s6 + $0x10] sm:$0xff]
        %v882 = vld [vmem:[%s6 + $0x18] sm:$0xff]
        %v883 = vld [vmem:[%s6 + $0x20] sm:$0xff]
        %v884 = vld [vmem:[%s6 + $0x28] sm:$0xff]
        %v885 = vld [vmem:[%s6 + $0x30] sm:$0xff]
        %v886 = vld [vmem:[%s6 + $0x38] sm:$0xff]
        %v887 = vld [vmem:[%s6 + $0x40] sm:$0xff]
        %v888 = vld [vmem:[%s6 + $0x48] sm:$0xff]
        %v889 = vld [vmem:[%s6 + $0x50] sm:$0xff]
        %v890 = vld [vmem:[%s6 + $0x58] sm:$0xff]
        %v891 = vld [vmem:[%s7] sm:$0xff]
        %v892 = vld [vmem:[%s7 + $0x8] sm:$0xff]
        %v893 = vld [vmem:[%s7 + $0x10] sm:$0xff]
        %v894 = vld [vmem:[%s7 + $0x18] sm:$0xff]
        %v895 = vld [vmem:[%s7 + $0x20] sm:$0xff]
        %v896 = vld [vmem:[%s7 + $0x28] sm:$0xff]
        %v897 = vld [vmem:[%s7 + $0x30] sm:$0xff]
        %v898 = vld [vmem:[%s7 + $0x38] sm:$0xff]
        %v899 = vld [vmem:[%s7 + $0x40] sm:$0xff]
        %v900 = vld [vmem:[%s7 + $0x48] sm:$0xff]
        %v901 = vld [vmem:[%s7 + $0x50] sm:$0xff]
        %v902 = vld [vmem:[%s7 + $0x58] sm:$0xff]
        %904 = vset.pattern.permute.xlu0 0
        %905 = vperm.xlu0 %904, %v891
        %v906 = vpop.permute.xlu0 %905
        %909 = vset.pattern.permute.xlu0 0
        %910 = vperm.xlu0 %909, %v892
        %v911 = vpop.permute.xlu0 %910
        %914 = vset.pattern.permute.xlu0 0
        %915 = vperm.xlu0 %914, %v893
        %v916 = vpop.permute.xlu0 %915
        %919 = vset.pattern.permute.xlu0 0
        %920 = vperm.xlu0 %919, %v894
        %v921 = vpop.permute.xlu0 %920
        %924 = vset.pattern.permute.xlu0 0
        %925 = vperm.xlu0 %924, %v895
        %v926 = vpop.permute.xlu0 %925
        %929 = vset.pattern.permute.xlu0 0
        %930 = vperm.xlu0 %929, %v896
        %v931 = vpop.permute.xlu0 %930
        %934 = vset.pattern.permute.xlu0 0
        %935 = vperm.xlu0 %934, %v897
        %v936 = vpop.permute.xlu0 %935
        %939 = vset.pattern.permute.xlu0 0
        %940 = vperm.xlu0 %939, %v898
        %v941 = vpop.permute.xlu0 %940
        %944 = vset.pattern.permute.xlu0 0
        %945 = vperm.xlu0 %944, %v899
        %v946 = vpop.permute.xlu0 %945
        %949 = vset.pattern.permute.xlu0 0
        %950 = vperm.xlu0 %949, %v900
        %v951 = vpop.permute.xlu0 %950
        %954 = vset.pattern.permute.xlu0 0
        %955 = vperm.xlu0 %954, %v901
        %v956 = vpop.permute.xlu0 %955
        %959 = vset.pattern.permute.xlu0 0
        %960 = vperm.xlu0 %959, %v902
        %v961 = vpop.permute.xlu0 %960
        %vm963 = vcmask 261120
        %v965 = vsel %vm963, %v879, 0
        %v968 = vsel %vm963, %v880, 0
        %v971 = vsel %vm963, %v881, 0
        %v974 = vsel %vm963, %v882, 0
        %v977 = vsel %vm963, %v883, 0
        %v980 = vsel %vm963, %v884, 0
        %v983 = vsel %vm963, %v885, 0
        %v986 = vsel %vm963, %v886, 0
        %v989 = vsel %vm963, %v887, 0
        %v992 = vsel %vm963, %v888, 0
        %v995 = vsel %vm963, %v889, 0
        %v998 = vsel %vm963, %v890, 0
        %1000 = vmatprep.subr.mxu0 0.0
        %1001 = vmatpush1.msra.mxu0 0.0
        %1002 = vmatprep.subr.mxu0 0.0
        %1003 = vmatpush1.msra.mxu0 0.0
        %1004 = vmatprep.subr.mxu0 0.0
        %1005 = vmatpush1.msra.mxu0 0.0
        %1006 = vmatprep.subr.mxu0 0.0
        %1007 = vmatpush1.msra.mxu0 0.0
        %1008 = vmatprep.subr.mxu0 0.0
        %1009 = vmatpush1.msra.mxu0 0.0
        %1010 = vmatprep.subr.mxu0 0.0
        %1011 = vmatpush1.msra.mxu0 0.0
        %1012 = vmatprep.subr.mxu0 0.0
        %1013 = vmatpush1.msra.mxu0 0.0
        %1014 = vmatprep.subr.mxu0 0.0
        %1015 = vmatpush1.msra.mxu0 0.0
        %1016 = vmatprep.subr.mxu0 0.0
        %1017 = vmatpush1.msra.mxu0 0.0
        %1018 = vmatprep.subr.mxu0 0.0
        %1019 = vmatpush1.msra.mxu0 0.0
        %1020 = vmatprep.subr.mxu0 0.0
        %1021 = vmatpush1.msra.mxu0 0.0
        %1022 = vmatprep.subr.mxu0 0.0
        %1023 = vmatpush1.msra.mxu0 0.0
        %1024 = vmatprep.subr.mxu0 %v878
        %1025 = vmatpush1.msra.mxu0 %v877
        %1026 = vmatprep.subr.mxu0 %v876
        %1027 = vmatpush1.msra.mxu0 %v875
        %1028 = vmatprep.subr.mxu0 %v874
        %1029 = vmatpush1.msra.mxu0 %v873
        %1030 = vmatprep.subr.mxu0 %v872
        %1031 = vmatpush1.msra.mxu0 %v871
        %1032 = vmatprep.subr.mxu0 0.0
        %1033 = vmatpush2.msra.mxu0 0.0
        %1034 = vmatprep.subr.mxu0 0.0
        %1035 = vmatpush2.msra.mxu0 0.0
        %1036 = vmatprep.subr.mxu0 0.0
        %1037 = vmatpush2.msra.mxu0 0.0
        %1038 = vmatprep.subr.mxu0 0.0
        %1039 = vmatpush2.msra.mxu0 0.0
        %1040 = vmatprep.subr.mxu0 0.0
        %1041 = vmatpush2.msra.mxu0 0.0
        %1042 = vmatprep.subr.mxu0 0.0
        %1043 = vmatpush2.msra.mxu0 0.0
        %1044 = vmatprep.subr.mxu0 0.0
        %1045 = vmatpush2.msra.mxu0 0.0
        %1046 = vmatprep.subr.mxu0 0.0
        %1047 = vmatpush2.msra.mxu0 0.0
        %1048 = vmatprep.subr.mxu0 0.0
        %1049 = vmatpush2.msra.mxu0 0.0
        %1050 = vmatprep.subr.mxu0 0.0
        %1051 = vmatpush2.msra.mxu0 0.0
        %1052 = vmatprep.subr.mxu0 0.0
        %1053 = vmatpush2.msra.mxu0 0.0
        %1054 = vmatprep.subr.mxu0 0.0
        %1055 = vmatpush2.msra.mxu0 0.0
        %1056 = vmatprep.subr.mxu0 0.0
        %1057 = vmatpush2.msra.mxu0 0.0
        %1058 = vmatprep.subr.mxu0 0.0
        %1059 = vmatpush2.msra.mxu0 0.0
        %1060 = vmatprep.subr.mxu0 0.0
        %1061 = vmatpush2.msra.mxu0 0.0
        %1062 = vmatprep.subr.mxu0 0.0
        %1063 = vmatpush2.msra.mxu0 0.0
        %1064 = vmatprep.mubr.f32.mxu0 0.0
        %1065 = vmatmul.mubr.f32.gmra.mxu0 %v965
        %v1066 = vpop.f32.mrf.mxu0
        %v1067 = vadd.f32 %v906, %v1066
        %v1068 = vpop.f32.mrf.mxu0
        %v1069 = vadd.f32 %v906, %v1068
        %1070 = vmatprep.mubr.f32.mxu0 0.0
        %1071 = vmatmul.mubr.f32.gmra.mxu0 %v968
        %v1072 = vpop.f32.mrf.mxu0
        %v1073 = vadd.f32 %v911, %v1072
        %v1074 = vpop.f32.mrf.mxu0
        %v1075 = vadd.f32 %v911, %v1074
        %1076 = vmatprep.mubr.f32.mxu0 0.0
        %1077 = vmatmul.mubr.f32.gmra.mxu0 %v971
        %v1078 = vpop.f32.mrf.mxu0
        %v1079 = vadd.f32 %v916, %v1078
        %v1080 = vpop.f32.mrf.mxu0
        %v1081 = vadd.f32 %v916, %v1080
        %1082 = vmatprep.mubr.f32.mxu0 0.0
        %1083 = vmatmul.mubr.f32.gmra.mxu0 %v974
        %v1084 = vpop.f32.mrf.mxu0
        %v1085 = vadd.f32 %v921, %v1084
        %v1086 = vpop.f32.mrf.mxu0
        %v1087 = vadd.f32 %v921, %v1086
        %1088 = vmatprep.mubr.f32.mxu0 0.0
        %1089 = vmatmul.mubr.f32.gmra.mxu0 %v977
        %v1090 = vpop.f32.mrf.mxu0
        %v1091 = vadd.f32 %v926, %v1090
        %v1092 = vpop.f32.mrf.mxu0
        %v1093 = vadd.f32 %v926, %v1092
        %1094 = vmatprep.mubr.f32.mxu0 0.0
        %1095 = vmatmul.mubr.f32.gmra.mxu0 %v980
        %v1096 = vpop.f32.mrf.mxu0
        %v1097 = vadd.f32 %v931, %v1096
        %v1098 = vpop.f32.mrf.mxu0
        %v1099 = vadd.f32 %v931, %v1098
        %1100 = vmatprep.mubr.f32.mxu0 0.0
        %1101 = vmatmul.mubr.f32.gmra.mxu0 %v983
        %v1102 = vpop.f32.mrf.mxu0
        %v1103 = vadd.f32 %v936, %v1102
        %v1104 = vpop.f32.mrf.mxu0
        %v1105 = vadd.f32 %v936, %v1104
        %1106 = vmatprep.mubr.f32.mxu0 0.0
        %1107 = vmatmul.mubr.f32.gmra.mxu0 %v986
        %v1108 = vpop.f32.mrf.mxu0
        %v1109 = vadd.f32 %v941, %v1108
        %v1110 = vpop.f32.mrf.mxu0
        %v1111 = vadd.f32 %v941, %v1110
        %1112 = vmatprep.mubr.f32.mxu0 0.0
        %1113 = vmatmul.mubr.f32.gmra.mxu0 %v989
        %v1114 = vpop.f32.mrf.mxu0
        %v1115 = vadd.f32 %v946, %v1114
        %v1116 = vpop.f32.mrf.mxu0
        %v1117 = vadd.f32 %v946, %v1116
        %1118 = vmatprep.mubr.f32.mxu0 0.0
        %1119 = vmatmul.mubr.f32.gmra.mxu0 %v992
        %v1120 = vpop.f32.mrf.mxu0
        %v1121 = vadd.f32 %v951, %v1120
        %v1122 = vpop.f32.mrf.mxu0
        %v1123 = vadd.f32 %v951, %v1122
        %1124 = vmatprep.mubr.f32.mxu0 0.0
        %1125 = vmatmul.mubr.f32.gmra.mxu0 %v995
        %v1126 = vpop.f32.mrf.mxu0
        %v1127 = vadd.f32 %v956, %v1126
        %v1128 = vpop.f32.mrf.mxu0
        %v1129 = vadd.f32 %v956, %v1128
        %1130 = vmatprep.mubr.f32.mxu0 0.0
        %1131 = vmatmul.mubr.f32.gmra.mxu0 %v998
        %v1132 = vpop.f32.mrf.mxu0
        %v1133 = vadd.f32 %v961, %v1132
        %v1134 = vpop.f32.mrf.mxu0
        %v1135 = vadd.f32 %v961, %v1134
        %1136 = vdwg.mxu0
        %v1137 = vadd.f32 %v847, %v1067
        %v1138 = vadd.f32 %v848, %v1069
        %v1139 = vadd.f32 %v849, %v1073
        %v1140 = vadd.f32 %v850, %v1075
        %v1141 = vadd.f32 %v851, %v1079
        %v1142 = vadd.f32 %v852, %v1081
        %v1143 = vadd.f32 %v853, %v1085
        %v1144 = vadd.f32 %v854, %v1087
        %v1145 = vxor.u32 %v1137, 2147483648
        %v1146 = vxor.u32 %v1138, 2147483648
        %v1147 = vxor.u32 %v1139, 2147483648
        %v1148 = vxor.u32 %v1140, 2147483648
        %v1149 = vxor.u32 %v1141, 2147483648
        %v1150 = vxor.u32 %v1142, 2147483648
        %v1151 = vxor.u32 %v1143, 2147483648
        %v1152 = vxor.u32 %v1144, 2147483648
        %v1153 = vmul.f32 %v1145, 1.442695
        %v1154 = vpow.pop %v1153
        %v1155 = vmul.f32 %v1146, 1.442695
        %v1156 = vpow.pop %v1155
        %v1157 = vmul.f32 %v1147, 1.442695
        %v1158 = vpow.pop %v1157
        %v1159 = vmul.f32 %v1148, 1.442695
        %v1160 = vpow.pop %v1159
        %v1161 = vmul.f32 %v1149, 1.442695
        %v1162 = vpow.pop %v1161
        %v1163 = vmul.f32 %v1150, 1.442695
        %v1164 = vpow.pop %v1163
        %v1165 = vmul.f32 %v1151, 1.442695
        %v1166 = vpow.pop %v1165
        %v1167 = vmul.f32 %v1152, 1.442695
        %v1168 = vpow.pop %v1167
        %v1169 = vadd.f32 %v1154, 1.0
        %v1170 = vadd.f32 %v1156, 1.0
        %v1171 = vadd.f32 %v1158, 1.0
        %v1172 = vadd.f32 %v1160, 1.0
        %v1173 = vadd.f32 %v1162, 1.0
        %v1174 = vadd.f32 %v1164, 1.0
        %v1175 = vadd.f32 %v1166, 1.0
        %v1176 = vadd.f32 %v1168, 1.0
        %v1177 = vrcp.pop %v1169
        %v1178 = vmul.f32 1.0, %v1177
        %v1179 = vrcp.pop %v1170
        %v1180 = vmul.f32 1.0, %v1179
        %v1181 = vrcp.pop %v1171
        %v1182 = vmul.f32 1.0, %v1181
        %v1183 = vrcp.pop %v1172
        %v1184 = vmul.f32 1.0, %v1183
        %v1185 = vrcp.pop %v1173
        %v1186 = vmul.f32 1.0, %v1185
        %v1187 = vrcp.pop %v1174
        %v1188 = vmul.f32 1.0, %v1187
        %v1189 = vrcp.pop %v1175
        %v1190 = vmul.f32 1.0, %v1189
        %v1191 = vrcp.pop %v1176
        %v1192 = vmul.f32 1.0, %v1191
        %v1193 = vadd.f32 %v855, %v1091
        %v1194 = vadd.f32 %v856, %v1093
        %v1195 = vadd.f32 %v857, %v1097
        %v1196 = vadd.f32 %v858, %v1099
        %v1197 = vadd.f32 %v859, %v1103
        %v1198 = vadd.f32 %v860, %v1105
        %v1199 = vadd.f32 %v861, %v1109
        %v1200 = vadd.f32 %v862, %v1111
        %v1201 = vxor.u32 %v1193, 2147483648
        %v1202 = vxor.u32 %v1194, 2147483648
        %v1203 = vxor.u32 %v1195, 2147483648
        %v1204 = vxor.u32 %v1196, 2147483648
        %v1205 = vxor.u32 %v1197, 2147483648
        %v1206 = vxor.u32 %v1198, 2147483648
        %v1207 = vxor.u32 %v1199, 2147483648
        %v1208 = vxor.u32 %v1200, 2147483648
        %v1209 = vmul.f32 %v1201, 1.442695
        %v1210 = vpow.pop %v1209
        %v1211 = vmul.f32 %v1202, 1.442695
        %v1212 = vpow.pop %v1211
        %v1213 = vmul.f32 %v1203, 1.442695
        %v1214 = vpow.pop %v1213
        %v1215 = vmul.f32 %v1204, 1.442695
        %v1216 = vpow.pop %v1215
        %v1217 = vmul.f32 %v1205, 1.442695
        %v1218 = vpow.pop %v1217
        %v1219 = vmul.f32 %v1206, 1.442695
        %v1220 = vpow.pop %v1219
        %v1221 = vmul.f32 %v1207, 1.442695
        %v1222 = vpow.pop %v1221
        %v1223 = vmul.f32 %v1208, 1.442695
        %v1224 = vpow.pop %v1223
        %v1225 = vadd.f32 %v1210, 1.0
        %v1226 = vadd.f32 %v1212, 1.0
        %v1227 = vadd.f32 %v1214, 1.0
        %v1228 = vadd.f32 %v1216, 1.0
        %v1229 = vadd.f32 %v1218, 1.0
        %v1230 = vadd.f32 %v1220, 1.0
        %v1231 = vadd.f32 %v1222, 1.0
        %v1232 = vadd.f32 %v1224, 1.0
        %v1233 = vrcp.pop %v1225
        %v1234 = vmul.f32 1.0, %v1233
        %v1235 = vrcp.pop %v1226
        %v1236 = vmul.f32 1.0, %v1235
        %v1237 = vrcp.pop %v1227
        %v1238 = vmul.f32 1.0, %v1237
        %v1239 = vrcp.pop %v1228
        %v1240 = vmul.f32 1.0, %v1239
        %v1241 = vrcp.pop %v1229
        %v1242 = vmul.f32 1.0, %v1241
        %v1243 = vrcp.pop %v1230
        %v1244 = vmul.f32 1.0, %v1243
        %v1245 = vrcp.pop %v1231
        %v1246 = vmul.f32 1.0, %v1245
        %v1247 = vrcp.pop %v1232
        %v1248 = vmul.f32 1.0, %v1247
        %v1249 = vmul.f32 %v1178, %v1115
        %v1250 = vmul.f32 %v1180, %v1117
        %v1251 = vmul.f32 %v1182, %v1121
        %v1252 = vmul.f32 %v1184, %v1123
        %v1253 = vmul.f32 %v1186, %v1127
        %v1254 = vmul.f32 %v1188, %v1129
        %v1255 = vmul.f32 %v1190, %v1133
        %v1256 = vmul.f32 %v1192, %v1135
        %v1257 = vadd.f32 %v863, %v1249
        %v1258 = vadd.f32 %v864, %v1250
        %v1259 = vadd.f32 %v865, %v1251
        %v1260 = vadd.f32 %v866, %v1252
        %v1261 = vadd.f32 %v867, %v1253
        %v1262 = vadd.f32 %v868, %v1254
        %v1263 = vadd.f32 %v869, %v1255
        %v1264 = vadd.f32 %v870, %v1256
        %v1265 = vtanh.pop %v1257
        %v1266 = vtanh.pop %v1258
        %v1267 = vtanh.pop %v1259
        %v1268 = vtanh.pop %v1260
        %v1269 = vtanh.pop %v1261
        %v1270 = vtanh.pop %v1262
        %v1271 = vtanh.pop %v1263
        %v1272 = vtanh.pop %v1264
        %v1273 = vmul.f32 %v1234, %v871
        %v1274 = vmul.f32 %v1236, %v872
        %v1275 = vmul.f32 %v1238, %v873
        %v1276 = vmul.f32 %v1240, %v874
        %v1277 = vmul.f32 %v1242, %v875
        %v1278 = vmul.f32 %v1244, %v876
        %v1279 = vmul.f32 %v1246, %v877
        %v1280 = vmul.f32 %v1248, %v878
        %v1281 = vsub.f32 1.0, %v1234
        %v1282 = vsub.f32 1.0, %v1236
        %v1283 = vsub.f32 1.0, %v1238
        %v1284 = vsub.f32 1.0, %v1240
        %v1285 = vsub.f32 1.0, %v1242
        %v1286 = vsub.f32 1.0, %v1244
        %v1287 = vsub.f32 1.0, %v1246
        %v1288 = vsub.f32 1.0, %v1248
        %v1289 = vmul.f32 %v1281, %v1265
        %v1290 = vmul.f32 %v1282, %v1266
        %v1291 = vmul.f32 %v1283, %v1267
        %v1292 = vmul.f32 %v1284, %v1268
        %v1293 = vmul.f32 %v1285, %v1269
        %v1294 = vmul.f32 %v1286, %v1270
        %v1295 = vmul.f32 %v1287, %v1271
        %v1296 = vmul.f32 %v1288, %v1272
        %v1297 = vadd.f32 %v1273, %v1289
        %v1298 = vadd.f32 %v1274, %v1290
        %v1299 = vadd.f32 %v1275, %v1291
        %v1300 = vadd.f32 %v1276, %v1292
        %v1301 = vadd.f32 %v1277, %v1293
        %v1302 = vadd.f32 %v1278, %v1294
        %v1303 = vadd.f32 %v1279, %v1295
        %v1304 = vadd.f32 %v1280, %v1296
        %1305 = vst [vmem:[%s484] sm:$0xff] %v1297
        %1306 = vst [vmem:[%s484 + $0x8] sm:$0xff] %v1298
        %1307 = vst [vmem:[%s484 + $0x10] sm:$0xff] %v1299
        %1308 = vst [vmem:[%s484 + $0x18] sm:$0xff] %v1300
        %1309 = vst [vmem:[%s484 + $0x20] sm:$0xff] %v1301
        %1310 = vst [vmem:[%s484 + $0x28] sm:$0xff] %v1302
        %1311 = vst [vmem:[%s484 + $0x30] sm:$0xff] %v1303
        %1312 = vst [vmem:[%s484 + $0x38] sm:$0xff] %v1304
        %v1313 = vld [vmem:[%s8] sm:$0x1]
        %v1314 = vld [vmem:[#allocation2] sm:$0x1]
        %1316 = vset.pattern.permute.xlu0 0
        %1317 = vperm.xlu0 %1316, %v1314
        %v1318 = vpop.permute.xlu0 %1317
        %v1320 = vlaneseq
        %v1321 = vshrl.u32 %v1320, 7
        %v1322 = vsub.s32 0, %v1321
        %v1323 = vrot.slane %v1318, %v1322
        %v1325 = vsel %vm963, %v1313, 0
        %1327 = vmatprep.subr.mxu0 0.0
        %1328 = vmatpush1.msra.mxu0 0.0
        %1329 = vmatprep.subr.mxu0 0.0
        %1330 = vmatpush1.msra.mxu0 0.0
        %1331 = vmatprep.subr.mxu0 0.0
        %1332 = vmatpush1.msra.mxu0 0.0
        %1333 = vmatprep.subr.mxu0 0.0
        %1334 = vmatpush1.msra.mxu0 0.0
        %1335 = vmatprep.subr.mxu0 0.0
        %1336 = vmatpush1.msra.mxu0 0.0
        %1337 = vmatprep.subr.mxu0 0.0
        %1338 = vmatpush1.msra.mxu0 0.0
        %1339 = vmatprep.subr.mxu0 0.0
        %1340 = vmatpush1.msra.mxu0 0.0
        %1341 = vmatprep.subr.mxu0 0.0
        %1342 = vmatpush1.msra.mxu0 0.0
        %1343 = vmatprep.subr.mxu0 0.0
        %1344 = vmatpush1.msra.mxu0 0.0
        %1345 = vmatprep.subr.mxu0 0.0
        %1346 = vmatpush1.msra.mxu0 0.0
        %1347 = vmatprep.subr.mxu0 0.0
        %1348 = vmatpush1.msra.mxu0 0.0
        %1349 = vmatprep.subr.mxu0 0.0
        %1350 = vmatpush1.msra.mxu0 0.0
        %1351 = vmatprep.subr.mxu0 %v1304
        %1352 = vmatpush1.msra.mxu0 %v1303
        %1353 = vmatprep.subr.mxu0 %v1302
        %1354 = vmatpush1.msra.mxu0 %v1301
        %1355 = vmatprep.subr.mxu0 %v1300
        %1356 = vmatpush1.msra.mxu0 %v1299
        %1357 = vmatprep.subr.mxu0 %v1298
        %1358 = vmatpush1.msra.mxu0 %v1297
        %1359 = vmatprep.subr.mxu0 0.0
        %1360 = vmatpush2.msra.mxu0 0.0
        %1361 = vmatprep.subr.mxu0 0.0
        %1362 = vmatpush2.msra.mxu0 0.0
        %1363 = vmatprep.subr.mxu0 0.0
        %1364 = vmatpush2.msra.mxu0 0.0
        %1365 = vmatprep.subr.mxu0 0.0
        %1366 = vmatpush2.msra.mxu0 0.0
        %1367 = vmatprep.subr.mxu0 0.0
        %1368 = vmatpush2.msra.mxu0 0.0
        %1369 = vmatprep.subr.mxu0 0.0
        %1370 = vmatpush2.msra.mxu0 0.0
        %1371 = vmatprep.subr.mxu0 0.0
        %1372 = vmatpush2.msra.mxu0 0.0
        %1373 = vmatprep.subr.mxu0 0.0
        %1374 = vmatpush2.msra.mxu0 0.0
        %1375 = vmatprep.subr.mxu0 0.0
        %1376 = vmatpush2.msra.mxu0 0.0
        %1377 = vmatprep.subr.mxu0 0.0
        %1378 = vmatpush2.msra.mxu0 0.0
        %1379 = vmatprep.subr.mxu0 0.0
        %1380 = vmatpush2.msra.mxu0 0.0
        %1381 = vmatprep.subr.mxu0 0.0
        %1382 = vmatpush2.msra.mxu0 0.0
        %1383 = vmatprep.subr.mxu0 0.0
        %1384 = vmatpush2.msra.mxu0 0.0
        %1385 = vmatprep.subr.mxu0 0.0
        %1386 = vmatpush2.msra.mxu0 0.0
        %1387 = vmatprep.subr.mxu0 0.0
        %1388 = vmatpush2.msra.mxu0 0.0
        %1389 = vmatprep.subr.mxu0 0.0
        %1390 = vmatpush2.msra.mxu0 0.0
        %1391 = vmatprep.mubr.f32.mxu0 0.0
        %1392 = vmatmul.mubr.f32.gmra.mxu0 %v1325
        %v1393 = vpop.f32.mrf.mxu0
        %v1394 = vadd.f32 %v1323, %v1393
        %v1395 = vpop.f32.mrf.mxu0
        %v1396 = vadd.f32 %v1323, %v1395
        %1397 = vdwg.mxu0
        %v1398 = vxor.u32 %v1394, 2147483648
        %v1399 = vxor.u32 %v1396, 2147483648
        %v1400 = vmul.f32 %v1398, 1.442695
        %v1401 = vpow.pop %v1400
        %v1402 = vmul.f32 %v1399, 1.442695
        %v1403 = vpow.pop %v1402
        %v1404 = vadd.f32 %v1401, 1.0
        %v1405 = vadd.f32 %v1403, 1.0
        %v1406 = vrcp.pop %v1404
        %v1407 = vmul.f32 1.0, %v1406
        %v1408 = vrcp.pop %v1405
        %v1409 = vmul.f32 1.0, %v1408
        %v1412 = vcombine.low %v1407, %v1409
        %v1414 = vunpack.c.l.s4 1966171168
        %v1415 = vunpack.c.0.s8 %v1414
        %v1416 = vlaneseq
        %v1417 = vshrl.u32 %v1416, 7
        %v1418 = vsub.s32 %v1415, %v1417
        %v1419 = vrot.slane %v1412, %v1418
        %v1421 = vunpack.c.l.s4 1966171168
        %v1422 = vunpack.c.0.s8 %v1421
        %v1423 = vlaneseq
        %v1424 = vshrl.u32 %v1423, 7
        %v1425 = vsub.s32 %v1422, %v1424
        %v1426 = vrot.slane %v1419, %v1425
        %v1428 = vlaneseq
        %vm1429 = vcmp.ge.s32.totalorder %v1428, 0
        %vm1430 = vcmp.lt.s32.totalorder %v1428, 256
        %vm1431 = vmand %vm1429, %vm1430
        %1432 = vst.msk [vmem:[%s508] sm:$0x3] %vm1431, %v1426
        %v1433 = vld [vmem:[%s501] sm:$0x3]
        %v1434 = vlog2.pop %v1433
        %v1435 = vmul.f32 %v1434, 0.6931472
        %v1437 = vlaneseq
        %v1438 = vshrl.u32 %v1437, 7
        %v1439 = vsub.s32 0, %v1438
        %v1440 = vrot.slane %v1435, %v1439
        %v1441 = vlaneseq
        %v1442 = vshrl.u32 %v1441, 7
        %v1443 = vsub.s32 1, %v1442
        %v1444 = vrot.slane %v1435, %v1443
        %v1447 = vadd.f32 %v1394, %v1440
        %v1448 = vadd.f32 %v1396, %v1444
        %v1449 = vsub.f32 0.0, %v1433
        %v1450 = vadd.f32 %v1449, 1.0
        %v1451 = vlog2.pop %v1450
        %v1452 = vmul.f32 %v1451, 0.6931472
        %v1453 = vmul.f32 -0.5, %v1449
        %v1454 = vadd.f32 %v1453, 1.0
        %v1455 = vmul.f32 %v1454, %v1449
        %v1456 = vand.u32 2147483647, %v1449
        %vm1457 = vcmp.lt.f32.partialorder %v1456, 0.0004427343
        %v1458 = vsel %vm1457, %v1455, %v1452
        %v1460 = vlaneseq
        %v1461 = vshrl.u32 %v1460, 7
        %v1462 = vsub.s32 0, %v1461
        %v1463 = vrot.slane %v1458, %v1462
        %v1464 = vlaneseq
        %v1465 = vshrl.u32 %v1464, 7
        %v1466 = vsub.s32 1, %v1465
        %v1467 = vrot.slane %v1458, %v1466
        %v1470 = vsub.f32 %v1447, %v1463
        %v1471 = vsub.f32 %v1448, %v1467
        %v1472 = vxor.u32 %v1470, 2147483648
        %v1473 = vxor.u32 %v1471, 2147483648
        %v1474 = vmul.f32 %v1472, 1.442695
        %v1475 = vpow.pop %v1474
        %v1476 = vmul.f32 %v1473, 1.442695
        %v1477 = vpow.pop %v1476
        %v1478 = vadd.f32 %v1475, 1.0
        %v1479 = vadd.f32 %v1477, 1.0
        %v1480 = vrcp.pop %v1478
        %v1481 = vmul.f32 1.0, %v1480
        %v1482 = vrcp.pop %v1479
        %v1483 = vmul.f32 1.0, %v1482
        %v1486 = vcombine.low %v1481, %v1483
        %v1488 = vunpack.c.l.s4 1966171168
        %v1489 = vunpack.c.0.s8 %v1488
        %v1490 = vlaneseq
        %v1491 = vshrl.u32 %v1490, 7
        %v1492 = vsub.s32 %v1489, %v1491
        %v1493 = vrot.slane %v1486, %v1492
        %v1495 = vunpack.c.l.s4 1966171168
        %v1496 = vunpack.c.0.s8 %v1495
        %v1497 = vlaneseq
        %v1498 = vshrl.u32 %v1497, 7
        %v1499 = vsub.s32 %v1496, %v1498
        %v1500 = vrot.slane %v1493, %v1499
        %1502 = vst.msk [vmem:[%s478] sm:$0x3] %vm1431, %v1500
        %s1503 = sand.u32 %s262, 1
        %s1504 = scalar_lea.sflag [#allocation5], %s1503
        %s1505 = sand.u32 %s262, 1
        %s1506 = smul.addr %s1505, 2
        %s1507 = scalar_lea.vmem [#allocation4], %s1506
        %s1508 = sand.u32 %s288, 1
        %s1509 = sand.u32 %s288, 1
        %s1510 = smul.addr %s1509, 64
        %s1511 = scalar_lea.vmem [#allocation6], %s1510
        %s1512 = smul.u32 2, %s29
        %p1513 = scmp.lt.s32.totalorder %s1512, 7
        %s1514 = scalar_select %p1513, %s1512, 7
        %s1515 = scalar_lea.vmem %s12, %s1514
        // Predicated region
        $region84: #{_mask_generator_forward.3} parent=78 // pred_check
          %p1516 = pneg %p272
        $region85: #{_mask_generator_forward.3} parent=78 // pred_check_branch
          %1518 = sbr.rel (%p1516) target = $region87
        $region86: #{_mask_generator_forward.3} parent=78 // pred_region
          %s1519 = smul.u32 2, %s29
          %s1521 = ssub.s32 32, 32
          %1522 = vsyncadd %s1504, %s1521
          %s1523 = smul.addr %s1519, 16
          %s1524 = scalar_lea.hbm %s10, %s1523
          %s1526 = sshll.u32 %s1507, 4
          %s1527 = int_to_ptr.vmem [resolvable:$true] %s1526
          %1529 = dma.vmem_to_hbm [thread:$0]  %s1527, 32, %s1524, %s1504
        $region87: #{_mask_generator_forward.3} parent=78 // pred_fallthru
          _
        // Predicated region
        $region88: #{_mask_generator_forward.3} parent=78 // pred_check
          %p1530 = pneg %p298
        $region89: #{_mask_generator_forward.3} parent=78 // pred_check_branch
          %1532 = sbr.rel (%p1530) target = $region91
        $region90: #{_mask_generator_forward.3} parent=78 // pred_region
          %s1533 = smul.u32 2, %s29
          %s1534 = smul.addr %s1533, 8
          %s1535 = scalar_lea.vmem %s11, %s1534
          // Predicated region
          $region92: #{_mask_generator_forward.3} parent=90 // pred_check
            _
          $region93: #{_mask_generator_forward.3} parent=90 // pred_check_branch
            %1537 = sbr.rel (0) target = $region95
          $region94: #{_mask_generator_forward.3} parent=90 // pred_region
            // Predicated region
            $region96: #{_mask_generator_forward.3} parent=94 // pred_check
              _
            $region97: #{_mask_generator_forward.3} parent=94 // pred_check_branch
              %1539 = sbr.rel (0) target = $region99
            $region98: #{_mask_generator_forward.3} parent=94 // pred_region
              loop: start=0, step=1, limit=1
              $region100: #{_mask_generator_forward.3} parent=98 // loop_pre_header
                _
              $region101: #{_mask_generator_forward.3} parent=98 // loop_header
                %s1541 = sphi 0, %s1545
                %p1542 = scmp.ge.s32.totalorder %s1541, 1
                %s1546 = sphi %s1511, %s1511
                %s1547 = sphi %s1535, %s1535
              $region102: #{_mask_generator_forward.3} parent=98 // loop_header_branch
                %1544 = sbr.rel (%p1542) target = $region106
              $region103: #{_mask_generator_forward.3} parent=98 // loop_body
                %v1548 = vld [vmem:[%s1546] sm:$0xff]
                %1549 = vst [vmem:[%s1547] sm:$0xff] %v1548
                %v1550 = vld [vmem:[%s1546 + $0x8] sm:$0xff]
                %1551 = vst [vmem:[%s1547 + $0x8] sm:$0xff] %v1550
                %v1552 = vld [vmem:[%s1546 + $0x10] sm:$0xff]
                %1553 = vst [vmem:[%s1547 + $0x40] sm:$0xff] %v1552
                %v1554 = vld [vmem:[%s1546 + $0x18] sm:$0xff]
                %1555 = vst [vmem:[%s1547 + $0x48] sm:$0xff] %v1554
                %v1556 = vld [vmem:[%s1546 + $0x20] sm:$0xff]
                %1557 = vst [vmem:[%s1547 + $0x80] sm:$0xff] %v1556
                %v1558 = vld [vmem:[%s1546 + $0x28] sm:$0xff]
                %1559 = vst [vmem:[%s1547 + $0x88] sm:$0xff] %v1558
                %v1560 = vld [vmem:[%s1546 + $0x30] sm:$0xff]
                %1561 = vst [vmem:[%s1547 + $0xc0] sm:$0xff] %v1560
                %v1562 = vld [vmem:[%s1546 + $0x38] sm:$0xff]
                %1563 = vst [vmem:[%s1547 + $0xc8] sm:$0xff] %v1562
              $region104: #{_mask_generator_forward.3} parent=98 // loop_footer
                %s1545 = sadd.s32 1, %s1541
              $region105: #{_mask_generator_forward.3} parent=98 // loop_footer_branch
                %1540 = sbr.rel target = $region101
              $region106: #{_mask_generator_forward.3} parent=98 // loop_exit
                _
            $region99: #{_mask_generator_forward.3} parent=94 // pred_fallthru
              _
            // Predicated region
            $region107: #{_mask_generator_forward.3} parent=94 // pred_check
              _
            $region108: #{_mask_generator_forward.3} parent=94 // pred_check_branch
              %1565 = sbr.rel target = $region110
            $region109: #{_mask_generator_forward.3} parent=94 // pred_region
              _
            $region110: #{_mask_generator_forward.3} parent=94 // pred_fallthru
              _
          $region95: #{_mask_generator_forward.3} parent=90 // pred_fallthru
            _
          %1566 = vnop
        $region91: #{_mask_generator_forward.3} parent=78 // pred_fallthru
          _
        // Predicated region
        $region111: #{_mask_generator_forward.3} parent=78 // pred_check
          %p1567 = pneg %p324
        $region112: #{_mask_generator_forward.3} parent=78 // pred_check_branch
          %1569 = sbr.rel (%p1567) target = $region114
        $region113: #{_mask_generator_forward.3} parent=78 // pred_region
          %s1570 = smul.u32 2, %s29
        $region114: #{_mask_generator_forward.3} parent=78 // pred_fallthru
          _
      $region79: #{_mask_generator_forward.3} parent=5 // pred_fallthru
        _
      %p1571 = scmp.le.s32.totalorder 2, %s24
      // Predicated region
      $region115: #{_mask_generator_forward.3} parent=5 // pred_check
        %p1572 = pneg %p1571
      $region116: #{_mask_generator_forward.3} parent=5 // pred_check_branch
        %1574 = sbr.rel (%p1572) target = $region118
      $region117: #{_mask_generator_forward.3} parent=5 // pred_region
        %s1575 = ssub.s32 %s24, 2
        // Predicated region
        $region119: #{_mask_generator_forward.3} parent=117 // pred_check
          %p1576 = pneg %p278
        $region120: #{_mask_generator_forward.3} parent=117 // pred_check_branch
          %1578 = sbr.rel (%p1576) target = $region122
        $region121: #{_mask_generator_forward.3} parent=117 // pred_region
          %s1579 = sand.u32 %s263, 1
          %s1580 = scalar_lea.sflag [#allocation5], %s1579
          %s1581 = sand.u32 %s263, 1
          %s1582 = smul.addr %s1581, 2
          %s1583 = scalar_lea.vmem [#allocation4], %s1582
          %1584 = dma.done %s1580, 32
        $region122: #{_mask_generator_forward.3} parent=117 // pred_fallthru
          _
        // Predicated region
        $region123: #{_mask_generator_forward.3} parent=117 // pred_check
          %p1585 = pneg %p304
        $region124: #{_mask_generator_forward.3} parent=117 // pred_check_branch
          %1587 = sbr.rel (%p1585) target = $region126
        $region125: #{_mask_generator_forward.3} parent=117 // pred_region
          %s1588 = sand.u32 %s289, 1
          %s1589 = sand.u32 %s289, 1
          %s1590 = smul.addr %s1589, 64
          %s1591 = scalar_lea.vmem [#allocation6], %s1590
        $region126: #{_mask_generator_forward.3} parent=117 // pred_fallthru
          _
        // Predicated region
        $region127: #{_mask_generator_forward.3} parent=117 // pred_check
          %p1592 = pneg %p330
        $region128: #{_mask_generator_forward.3} parent=117 // pred_check_branch
          %1594 = sbr.rel (%p1592) target = $region130
        $region129: #{_mask_generator_forward.3} parent=117 // pred_region
          %s1595 = smul.u32 2, %s30
          %p1596 = scmp.lt.s32.totalorder %s1595, 7
          %s1597 = scalar_select %p1596, %s1595, 7
          %s1598 = scalar_lea.vmem %s12, %s1597
        $region130: #{_mask_generator_forward.3} parent=117 // pred_fallthru
          _
      $region118: #{_mask_generator_forward.3} parent=5 // pred_fallthru
        _
    $region6: #{_mask_generator_forward.3} parent=1 // loop_footer
      %s28 = sadd.s32 1, %s24
    $region7: #{_mask_generator_forward.3} parent=1 // loop_footer_branch
      %23 = sbr.rel target = $region3
    $region8: #{_mask_generator_forward.3} parent=1 // loop_exit
      _
    %1599 = vsyncpa [#allocation5], 1
    %s1600 = scalar_lea.sflag [#allocation5], 1
    %1601 = vsyncpa %s1600, 1

</llo_original>
